<compile_context>
chip_gen: v5e
topology: v5e:2x2
jax: 0.10.0
libtpu: 0.0.40
codegen_flags: <defaults>
</compile_context>

<pallas_src>
import functools

import jax
import jax.numpy as jnp
from jax.experimental import pallas as pl
from jax.experimental.pallas import tpu as pltpu

LN_EPS = 1e-6
_SINGLE_K_MAX = 1536          # reduction dims <= this use the fused single-K path


def _pick_tile(dim: int, target: int) -> int:
    """Use `target` (a multiple of 8/128) if it divides `dim`, else the full dim."""
    if dim >= target and dim % target == 0:
        return target
    return dim


# ---------------------------------------------------------------------------
# Exact GELU.  lax.erf has no Mosaic lowering, so erf is evaluated with the
# Abramowitz & Stegun 7.1.26 polynomial (|err| <= 1.5e-7) using only exp/mul/add.
# TODO(synk): replace with lax.erf if/when Mosaic grows an erf lowering rule.
# ---------------------------------------------------------------------------
_ERF_A1 = 0.254829592
_ERF_A2 = -0.284496736
_ERF_A3 = 1.421413741
_ERF_A4 = -1.453152027
_ERF_A5 = 1.061405429
_ERF_P = 0.3275911
_INV_SQRT2 = 0.7071067811865476


def _erf_approx(x):
    sign = jnp.where(x >= 0.0, 1.0, -1.0)
    ax = jnp.abs(x)
    t = 1.0 / (1.0 + _ERF_P * ax)
    poly = ((((_ERF_A5 * t + _ERF_A4) * t + _ERF_A3) * t + _ERF_A2) * t + _ERF_A1) * t
    return sign * (1.0 - poly * jnp.exp(-ax * ax))


def _gelu_exact(x):
    return 0.5 * x * (1.0 + _erf_approx(x * _INV_SQRT2))


def _layernorm_f32(x_f32, w_f32, b_f32, eps):
    mu = jnp.mean(x_f32, axis=-1, keepdims=True)
    xc = x_f32 - mu
    var = jnp.mean(xc * xc, axis=-1, keepdims=True)
    return xc * jax.lax.rsqrt(var + eps) * w_f32 + b_f32


# ---------------------------------------------------------------------------
# 0. Standalone LayerNorm kernel (fallback only; default path fuses LN into
#    the consuming matmul).
# ---------------------------------------------------------------------------
def _layernorm_kernel(x_ref, w_ref, b_ref, o_ref, *, eps):
    x = x_ref[...].astype(jnp.float32)
    y = _layernorm_f32(x, w_ref[...].astype(jnp.float32),
                       b_ref[...].astype(jnp.float32), eps)
    o_ref[...] = y.astype(o_ref.dtype)


def layernorm(x, w, b, *, eps=LN_EPS, tile_m=256):
    M, D = x.shape
    tm = _pick_tile(M, tile_m)
    return pl.pallas_call(
        functools.partial(_layernorm_kernel, eps=eps),
        out_shape=jax.ShapeDtypeStruct((M, D), x.dtype),
        grid_spec=pltpu.PrefetchScalarGridSpec(
            num_scalar_prefetch=0,
            grid=(M // tm,),
            in_specs=[
                pl.BlockSpec((tm, D), lambda i: (i, 0)),
                pl.BlockSpec((1, D), lambda i: (0, 0)),
                pl.BlockSpec((1, D), lambda i: (0, 0)),
            ],
            out_specs=pl.BlockSpec((tm, D), lambda i: (i, 0)),
        ),
        compiler_params=pltpu.CompilerParams(
            dimension_semantics=("parallel",),
        ),
    )(x, w.reshape(1, D), b.reshape(1, D))


# ---------------------------------------------------------------------------
# 1. Fused Linear kernel, single K block:
#       y = [gelu]( LN?(x) @ W + b ) [+ residual]
#    Grid (M/TM, N/TN); the x tile carries the full reduction dim so LayerNorm
#    can be computed in-register (no extra HBM pass), and no accumulator
#    scratch / K-phase branching is needed.
# ---------------------------------------------------------------------------
def _linear_fused_kernel(*refs, activation, add_residual, fuse_ln, eps):
    idx = 0
    x_ref = refs[idx]; idx += 1
    w_ref = refs[idx]; idx += 1
    b_ref = refs[idx]; idx += 1
    if fuse_ln:
        ln_w_ref = refs[idx]
        ln_b_ref = refs[idx + 1]
        idx += 2
    if add_residual:
        res_ref = refs[idx]; idx += 1
    o_ref = refs[idx]

    xv = x_ref[...]
    if fuse_ln:
        xv = _layernorm_f32(
            xv.astype(jnp.float32),
            ln_w_ref[...].astype(jnp.float32),
            ln_b_ref[...].astype(jnp.float32),
            eps,
        )

    y = jnp.dot(xv, w_ref[...], preferred_element_type=jnp.float32)
    y = y + b_ref[...].astype(jnp.float32)
    if activation == "gelu":
        y = _gelu_exact(y)
    if add_residual:
        y = y + res_ref[...].astype(jnp.float32)
    o_ref[...] = y.astype(o_ref.dtype)


# ---------------------------------------------------------------------------
# 2. Tiled-K Linear kernel (large reduction dims only):
#    Grid (M/TM, N/TN, K/TK); K is the pipelined reduction; f32 accumulator.
# ---------------------------------------------------------------------------
def _linear_tiled_kernel(*refs, activation, add_residual):
    x_ref, w_ref, b_ref = refs[0], refs[1], refs[2]
    idx = 3
    if add_residual:
        res_ref = refs[idx]; idx += 1
    o_ref = refs[idx]
    acc_ref = refs[idx + 1]

    k = pl.program_id(2)

    @pl.when(k == 0)
    def _():
        acc_ref[...] = jnp.zeros_like(acc_ref)

    acc_ref[...] += jnp.dot(
        x_ref[...], w_ref[...], preferred_element_type=jnp.float32
    )

    @pl.when(k == pl.num_programs(2) - 1)
    def _():
        y = acc_ref[...] + b_ref[...].astype(jnp.float32)
        if activation == "gelu":
            y = _gelu_exact(y)
        if add_residual:
            y = y + res_ref[...].astype(jnp.float32)
        o_ref[...] = y.astype(o_ref.dtype)


def linear(x, w, b, *, ln_w=None, ln_b=None, residual=None, activation=None,
           eps=LN_EPS, tile_m=256, tile_n=256, tile_k=512):
    """y = [gelu]( LN?(x) @ W + b ) [+ residual], fused in one pallas_call."""
    M, K = x.shape
    K2, N = w.shape
    assert K == K2
    tm = _pick_tile(M, tile_m)
    tn = _pick_tile(N, tile_n)
    b2 = b.reshape(1, N)
    add_res = residual is not None
    fuse_ln = ln_w is not None
    single_k = K <= _SINGLE_K_MAX

    if fuse_ln and not single_k:
        # Reduction dim too big to hold in one block: do LN standalone.
        # TODO(synk): not hit for this module (K = dim <= ~1.5k).
        x = layernorm(x, ln_w, ln_b, eps=eps)
        fuse_ln = False

    itemsize = int(jnp.dtype(x.dtype).itemsize)
    bytes_accessed = (M * K + K * N + M * N + (M * N if add_res else 0)) * itemsize
    cost = pl.CostEstimate(
        flops=2 * M * N * K,
        transcendentals=(M * N if activation == "gelu" else 0),
        bytes_accessed=bytes_accessed,
    )

    if single_k:
        in_specs = [
            pl.BlockSpec((tm, K), lambda i, j: (i, 0)),
            pl.BlockSpec((K, tn), lambda i, j: (0, j)),
            pl.BlockSpec((1, tn), lambda i, j: (0, j)),
        ]
        args = [x, w, b2]
        if fuse_ln:
            in_specs += [
                pl.BlockSpec((1, K), lambda i, j: (0, 0)),
                pl.BlockSpec((1, K), lambda i, j: (0, 0)),
            ]
            args += [ln_w.reshape(1, K), ln_b.reshape(1, K)]
        if add_res:
            in_specs.append(pl.BlockSpec((tm, tn), lambda i, j: (i, j)))
            args.append(residual)

        return pl.pallas_call(
            functools.partial(_linear_fused_kernel, activation=activation,
                              add_residual=add_res, fuse_ln=fuse_ln, eps=eps),
            out_shape=jax.ShapeDtypeStruct((M, N), x.dtype),
            grid_spec=pltpu.PrefetchScalarGridSpec(
                num_scalar_prefetch=0,
                grid=(M // tm, N // tn),
                in_specs=in_specs,
                out_specs=pl.BlockSpec((tm, tn), lambda i, j: (i, j)),
            ),
            compiler_params=pltpu.CompilerParams(
                dimension_semantics=("parallel", "parallel"),
            ),
            cost_estimate=cost,
        )(*args)

    # --- tiled-K fallback (large reduction dims, e.g. big MLP hidden) ---
    tk = _pick_tile(K, tile_k)
    in_specs = [
        pl.BlockSpec((tm, tk), lambda i, j, kk: (i, kk)),
        pl.BlockSpec((tk, tn), lambda i, j, kk: (kk, j)),
        pl.BlockSpec((1, tn), lambda i, j, kk: (0, j)),
    ]
    args = [x, w, b2]
    if add_res:
        in_specs.append(pl.BlockSpec((tm, tn), lambda i, j, kk: (i, j)))
        args.append(residual)

    return pl.pallas_call(
        functools.partial(_linear_tiled_kernel, activation=activation,
                          add_residual=add_res),
        out_shape=jax.ShapeDtypeStruct((M, N), x.dtype),
        grid_spec=pltpu.PrefetchScalarGridSpec(
            num_scalar_prefetch=0,
            grid=(M // tm, N // tn, K // tk),
            in_specs=in_specs,
            out_specs=pl.BlockSpec((tm, tn), lambda i, j, kk: (i, j)),
            scratch_shapes=[pltpu.VMEM((tm, tn), jnp.float32)],
        ),
        compiler_params=pltpu.CompilerParams(
            dimension_semantics=("parallel", "parallel", "arbitrary"),
        ),
        cost_estimate=cost,
    )(*args)


# ---------------------------------------------------------------------------
# 3. Attention kernel (flash-style online softmax).
#    q, k, v: (B*H, N, Dh).  Grid (B*H, N/TQ, N/TK); KV axis is the reduction.
# ---------------------------------------------------------------------------
def _attn_kernel(q_ref, k_ref, v_ref, o_ref, m_sc, l_sc, acc_sc, *, scale):
    kv = pl.program_id(2)

    @pl.when(kv == 0)
    def _():
        m_sc[...] = jnp.full(m_sc.shape, -jnp.inf, dtype=jnp.float32)
        l_sc[...] = jnp.zeros(l_sc.shape, jnp.float32)
        acc_sc[...] = jnp.zeros(acc_sc.shape, jnp.float32)

    q = q_ref[...].astype(jnp.float32) * scale               # (1, TQ, Dh)
    k = k_ref[...].astype(jnp.float32)                       # (1, TK, Dh)
    v = v_ref[...].astype(jnp.float32)                       # (1, TK, Dh)

    s = jnp.einsum("bqd,bkd->bqk", q, k,
                   preferred_element_type=jnp.float32)       # (1, TQ, TK)
    m_new = jnp.maximum(m_sc[...], s.max(axis=-1, keepdims=True))
    alpha = jnp.exp(m_sc[...] - m_new)
    p = jnp.exp(s - m_new)
    l_sc[...] = alpha * l_sc[...] + p.sum(axis=-1, keepdims=True)
    acc_sc[...] = alpha * acc_sc[...] + jnp.einsum(
        "bqk,bkd->bqd", p, v, preferred_element_type=jnp.float32)
    m_sc[...] = m_new

    @pl.when(kv == pl.num_programs(2) - 1)
    def _():
        inv_l = pl.reciprocal(l_sc[...], approx=True)
        o_ref[...] = (acc_sc[...] * inv_l).astype(o_ref.dtype)


def attention(q, k, v, *, scale, tile_q=256, tile_k=256):
    BH, N, Dh = q.shape
    tq = _pick_tile(N, tile_q)
    tk = _pick_tile(N, tile_k)
    return pl.pallas_call(
        functools.partial(_attn_kernel, scale=scale),
        out_shape=jax.ShapeDtypeStruct((BH, N, Dh), q.dtype),
        grid_spec=pltpu.PrefetchScalarGridSpec(
            num_scalar_prefetch=0,
            grid=(BH, N // tq, N // tk),
            in_specs=[
                pl.BlockSpec((1, tq, Dh), lambda bh, qi, ki: (bh, qi, 0)),
                pl.BlockSpec((1, tk, Dh), lambda bh, qi, ki: (bh, ki, 0)),
                pl.BlockSpec((1, tk, Dh), lambda bh, qi, ki: (bh, ki, 0)),
            ],
            out_specs=pl.BlockSpec((1, tq, Dh), lambda bh, qi, ki: (bh, qi, 0)),
            scratch_shapes=[
                pltpu.VMEM((1, tq, 1), jnp.float32),
                pltpu.VMEM((1, tq, 1), jnp.float32),
                pltpu.VMEM((1, tq, Dh), jnp.float32),
            ],
        ),
        compiler_params=pltpu.CompilerParams(
            dimension_semantics=("parallel", "parallel", "arbitrary"),
        ),
    )(q, k, v)


# ---------------------------------------------------------------------------
# EvaBlock forward (default config, adapter=False, gamma=None, rope=None).
# ---------------------------------------------------------------------------
def eva_block_forward(x, params, *, num_heads):
    B, N, D = x.shape
    H = num_heads
    Dh = D // H
    xr = x.reshape(B * N, D)

    # --- attention branch: x + proj(attn(norm1(x))) ---
    # LayerNorm is fused into the QKV matmul.
    qkv = linear(xr, params["qkv_w"], params["qkv_b"],
                 ln_w=params["ln1_w"], ln_b=params["ln1_b"])   # (B*N, 3*D)
    qkv = qkv.reshape(B, N, 3, H, Dh).transpose(2, 0, 3, 1, 4)  # (3, B, H, N, Dh)
    q = qkv[0].reshape(B * H, N, Dh)
    k = qkv[1].reshape(B * H, N, Dh)
    v = qkv[2].reshape(B * H, N, Dh)
    a = attention(q, k, v, scale=Dh ** -0.5)                   # (B*H, N, Dh)
    a = a.reshape(B, H, N, Dh).transpose(0, 2, 1, 3).reshape(B * N, D)
    x1 = linear(a, params["proj_w"], params["proj_b"], residual=xr)

    # --- MLP branch: x + fc2(gelu(fc1(norm2(x)))) ---
    # LayerNorm fused into fc1; residual fused into fc2.
    m = linear(x1, params["fc1_w"], params["fc1_b"],
               ln_w=params["ln2_w"], ln_b=params["ln2_b"], activation="gelu")
    x2 = linear(m, params["fc2_w"], params["fc2_b"], residual=x1)

    return x2.reshape(B, N, D)


# ---------------------------------------------------------------------------
# Pure-JAX reference
# ---------------------------------------------------------------------------
def eva_block_reference(x, params, *, num_heads, eps=LN_EPS):
    B, N, D = x.shape
    H = num_heads
    Dh = D // H

    def ln(z, w, b):
        zf = z.astype(jnp.float32)
        mu = jnp.mean(zf, axis=-1, keepdims=True)
        var = jnp.mean((zf - mu) ** 2, axis=-1, keepdims=True)
        return ((zf - mu) * jax.lax.rsqrt(var + eps) * w + b).astype(z.dtype)

    h = ln(x, params["ln1_w"], params["ln1_b"])
    qkv = h @ params["qkv_w"] + params["qkv_b"]
    qkv = qkv.reshape(B, N, 3, H, Dh).transpose(2, 0, 3, 1, 4)
    q, k, v = qkv[0], qkv[1], qkv[2]
    s = jnp.einsum("bhqd,bhkd->bhqk", q, k) * (Dh ** -0.5)
    p = jax.nn.softmax(s, axis=-1)
    a = jnp.einsum("bhqk,bhkd->bhqd", p, v)
    a = a.transpose(0, 2, 1, 3).reshape(B, N, D)
    x1 = x + (a @ params["proj_w"] + params["proj_b"])
    h2 = ln(x1, params["ln2_w"], params["ln2_b"])
    m = jax.nn.gelu(h2 @ params["fc1_w"] + params["fc1_b"], approximate=False)
    x2 = x1 + (m @ params["fc2_w"] + params["fc2_b"])
    return x2


if __name__ == "__main__":
    key = jax.random.PRNGKey(0)
    B, N, D = 2, 8, 32          # batch, seq, hidden
    num_heads = 4
    hidden = int(D * 4.0)

    keys = jax.random.split(key, 12)
    wstd = 0.05
    x = jax.random.normal(keys[0], (B, N, D), dtype=jnp.float32)
    params = dict(
        ln1_w=jnp.ones((D,), jnp.float32) + 0.1 * jax.random.normal(keys[1], (D,)),
        ln1_b=0.1 * jax.random.normal(keys[2], (D,)),
        qkv_w=wstd * jax.random.normal(keys[3], (D, 3 * D), dtype=jnp.float32),
        qkv_b=jnp.concatenate([
            0.02 * jax.random.normal(keys[4], (D,)),   # q_bias (parameter)
            jnp.zeros((D,), jnp.float32),              # k_bias (zeros buffer)
            0.02 * jax.random.normal(keys[5], (D,)),   # v_bias (parameter)
        ]),
        proj_w=wstd * jax.random.normal(keys[6], (D, D), dtype=jnp.float32),
        proj_b=0.02 * jax.random.normal(keys[7], (D,)),
        ln2_w=jnp.ones((D,), jnp.float32) + 0.1 * jax.random.normal(keys[8], (D,)),
        ln2_b=0.1 * jax.random.normal(keys[9], (D,)),
        fc1_w=wstd * jax.random.normal(keys[10], (D, hidden), dtype=jnp.float32),
        fc1_b=jnp.zeros((hidden,), jnp.float32),
        fc2_w=wstd * jax.random.normal(keys[11], (hidden, D), dtype=jnp.float32),
        fc2_b=jnp.zeros((D,), jnp.float32),
    )

    fwd = jax.jit(functools.partial(eva_block_forward, num_heads=num_heads))
    out = fwd(x, params)
    jax.block_until_ready(out)

    ref = eva_block_reference(x, params, num_heads=num_heads)
    assert out.shape == (B, N, D), out.shape
    err = float(jnp.max(jnp.abs(out.astype(jnp.float32) - ref.astype(jnp.float32))))
    assert err < 2e-2, f"max abs err {err}"
    print("KERNEL_OK")
</pallas_src>

<mosaic_0001>
module attributes {stable_mosaic.version = 11 : i64} {
  func.func @_attn_kernel(%arg0: i32, %arg1: i32, %arg2: i32, %arg3: memref<1x8x8xf32, #tpu.memory_space<vmem>>, %arg4: memref<1x8x8xf32, #tpu.memory_space<vmem>>, %arg5: memref<1x8x8xf32, #tpu.memory_space<vmem>>, %arg6: memref<1x8x8xf32, #tpu.memory_space<vmem>>, %arg7: memref<1x8x1xf32, #tpu.memory_space<vmem>>, %arg8: memref<1x8x1xf32, #tpu.memory_space<vmem>>, %arg9: memref<1x8x8xf32, #tpu.memory_space<vmem>>) attributes {dimension_semantics = [#tpu.dimension_semantics<parallel>, #tpu.dimension_semantics<parallel>, #tpu.dimension_semantics<arbitrary>], iteration_bounds = array<i64: 8, 1, 1>, scalar_prefetch = 0 : i64, scratch_operands = 3 : i64, tpu.core_type = #tpu.core_type<tc>, window_params = [{transform_indices = @transform_0, window_bounds = array<i64: 1, 8, 8>}, {transform_indices = @transform_1, window_bounds = array<i64: 1, 8, 8>}, {transform_indices = @transform_2, window_bounds = array<i64: 1, 8, 8>}, {transform_indices = @transform_3, window_bounds = array<i64: 1, 8, 8>}]} {
    %c0_i32 = arith.constant 0 : i32
    %0 = arith.cmpi eq, %arg2, %c0_i32 : i32
    %1 = arith.extui %0 : i1 to i32
    %c0_i32_0 = arith.constant 0 : i32
    %2 = arith.cmpi ne, %1, %c0_i32_0 : i32
    scf.if %2 {
      %cst_36 = arith.constant 0xFF800000 : f32
      %35 = vector.broadcast %cst_36 : f32 to vector<1x8x1xf32>
      %c0_37 = arith.constant 0 : index
      %c0_38 = arith.constant 0 : index
      %c0_39 = arith.constant 0 : index
      %36 = vector.load %arg7[%c0_37, %c0_38, %c0_39] : memref<1x8x1xf32, #tpu.memory_space<vmem>>, vector<1x8x1xf32>
      tpu.vector_store %arg7[%c0_37, %c0_38, %c0_39], %35 {strides = array<i32>} : memref<1x8x1xf32, #tpu.memory_space<vmem>>, vector<1x8x1xf32>,
      %cst_40 = arith.constant 0.000000e+00 : f32
      %37 = vector.broadcast %cst_40 : f32 to vector<1x8x1xf32>
      %c0_41 = arith.constant 0 : index
      %c0_42 = arith.constant 0 : index
      %c0_43 = arith.constant 0 : index
      %38 = vector.load %arg8[%c0_41, %c0_42, %c0_43] : memref<1x8x1xf32, #tpu.memory_space<vmem>>, vector<1x8x1xf32>
      tpu.vector_store %arg8[%c0_41, %c0_42, %c0_43], %37 {strides = array<i32>} : memref<1x8x1xf32, #tpu.memory_space<vmem>>, vector<1x8x1xf32>,
      %cst_44 = arith.constant 0.000000e+00 : f32
      %39 = vector.broadcast %cst_44 : f32 to vector<1x8x8xf32>
      %c0_45 = arith.constant 0 : index
      %c0_46 = arith.constant 0 : index
      %c0_47 = arith.constant 0 : index
      %40 = vector.load %arg9[%c0_45, %c0_46, %c0_47] : memref<1x8x8xf32, #tpu.memory_space<vmem>>, vector<1x8x8xf32>
      tpu.vector_store %arg9[%c0_45, %c0_46, %c0_47], %39 {strides = array<i32>} : memref<1x8x8xf32, #tpu.memory_space<vmem>>, vector<1x8x8xf32>,
    } else {
    }
    %c0 = arith.constant 0 : index
    %c0_1 = arith.constant 0 : index
    %c0_2 = arith.constant 0 : index
    %3 = vector.load %arg3[%c0, %c0_1, %c0_2] : memref<1x8x8xf32, #tpu.memory_space<vmem>>, vector<1x8x8xf32>
    %cst = arith.constant 0.353553385 : f32
    %4 = vector.broadcast %cst : f32 to vector<1x8x8xf32>
    %5 = arith.mulf %3, %4 : vector<1x8x8xf32>
    %c0_3 = arith.constant 0 : index
    %c0_4 = arith.constant 0 : index
    %c0_5 = arith.constant 0 : index
    %6 = vector.load %arg4[%c0_3, %c0_4, %c0_5] : memref<1x8x8xf32, #tpu.memory_space<vmem>>, vector<1x8x8xf32>
    %c0_6 = arith.constant 0 : index
    %c0_7 = arith.constant 0 : index
    %c0_8 = arith.constant 0 : index
    %7 = vector.load %arg5[%c0_6, %c0_7, %c0_8] : memref<1x8x8xf32, #tpu.memory_space<vmem>>, vector<1x8x8xf32>
    "tpu.trace_start"() <{level = 10 : i32, message = "bqd,bkd->bqk"}> : () -> ()
    %cst_9 = arith.constant dense<0.000000e+00> : vector<1x8x8xf32>
    %8 = tpu.matmul %5, %6, %cst_9 {dimension_numbers = #tpu.dot_dimension_numbers<[2], [2], [1], [1], [0, 0, 0, 1, 1, 1], [0], [0]>} : vector<1x8x8xf32>, vector<1x8x8xf32>, vector<1x8x8xf32> -> vector<1x8x8xf32>
    "tpu.trace_stop"() : () -> ()
    %c0_10 = arith.constant 0 : index
    %c0_11 = arith.constant 0 : index
    %c0_12 = arith.constant 0 : index
    %9 = vector.load %arg7[%c0_10, %c0_11, %c0_12] : memref<1x8x1xf32, #tpu.memory_space<vmem>>, vector<1x8x1xf32>
    %cst_13 = arith.constant dense<0xFF800000> : vector<1x8xf32>
    %10 = vector.multi_reduction <maximumf>, %8, %cst_13 [2] : vector<1x8x8xf32> to vector<1x8xf32>
    %11 = vector.shape_cast %10 : vector<1x8xf32> to vector<1x8x1xf32>
    %12 = arith.maximumf %9, %11 : vector<1x8x1xf32>
    %c0_14 = arith.constant 0 : index
    %c0_15 = arith.constant 0 : index
    %c0_16 = arith.constant 0 : index
    %13 = vector.load %arg7[%c0_14, %c0_15, %c0_16] : memref<1x8x1xf32, #tpu.memory_space<vmem>>, vector<1x8x1xf32>
    %14 = arith.subf %13, %12 : vector<1x8x1xf32>
    %15 = math.exp %14 : vector<1x8x1xf32>
    %16 = vector.broadcast %12 : vector<1x8x1xf32> to vector<1x8x8xf32>
    %17 = arith.subf %8, %16 : vector<1x8x8xf32>
    %18 = math.exp %17 : vector<1x8x8xf32>
    %c0_17 = arith.constant 0 : index
    %c0_18 = arith.constant 0 : index
    %c0_19 = arith.constant 0 : index
    %19 = vector.load %arg8[%c0_17, %c0_18, %c0_19] : memref<1x8x1xf32, #tpu.memory_space<vmem>>, vector<1x8x1xf32>
    %20 = arith.mulf %15, %19 : vector<1x8x1xf32>
    %cst_20 = arith.constant dense<0.000000e+00> : vector<1x8xf32>
    %21 = vector.multi_reduction <add>, %18, %cst_20 [2] : vector<1x8x8xf32> to vector<1x8xf32>
    %22 = vector.shape_cast %21 : vector<1x8xf32> to vector<1x8x1xf32>
    %23 = arith.addf %20, %22 : vector<1x8x1xf32>
    %c0_21 = arith.constant 0 : index
    %c0_22 = arith.constant 0 : index
    %c0_23 = arith.constant 0 : index
    %24 = vector.load %arg8[%c0_21, %c0_22, %c0_23] : memref<1x8x1xf32, #tpu.memory_space<vmem>>, vector<1x8x1xf32>
    tpu.vector_store %arg8[%c0_21, %c0_22, %c0_23], %23 {strides = array<i32>} : memref<1x8x1xf32, #tpu.memory_space<vmem>>, vector<1x8x1xf32>,
    %c0_24 = arith.constant 0 : index
    %c0_25 = arith.constant 0 : index
    %c0_26 = arith.constant 0 : index
    %25 = vector.load %arg9[%c0_24, %c0_25, %c0_26] : memref<1x8x8xf32, #tpu.memory_space<vmem>>, vector<1x8x8xf32>
    %26 = vector.broadcast %15 : vector<1x8x1xf32> to vector<1x8x8xf32>
    %27 = arith.mulf %26, %25 : vector<1x8x8xf32>
    "tpu.trace_start"() <{level = 10 : i32, message = "bqk,bkd->bqd"}> : () -> ()
    %cst_27 = arith.constant dense<0.000000e+00> : vector<1x8x8xf32>
    %28 = tpu.matmul %18, %7, %cst_27 {dimension_numbers = #tpu.dot_dimension_numbers<[2], [1], [1], [2], [0, 0, 0, 1, 1, 2], [0], [0]>} : vector<1x8x8xf32>, vector<1x8x8xf32>, vector<1x8x8xf32> -> vector<1x8x8xf32>
    "tpu.trace_stop"() : () -> ()
    %29 = arith.addf %27, %28 : vector<1x8x8xf32>
    %c0_28 = arith.constant 0 : index
    %c0_29 = arith.constant 0 : index
    %c0_30 = arith.constant 0 : index
    %30 = vector.load %arg9[%c0_28, %c0_29, %c0_30] : memref<1x8x8xf32, #tpu.memory_space<vmem>>, vector<1x8x8xf32>
    tpu.vector_store %arg9[%c0_28, %c0_29, %c0_30], %29 {strides = array<i32>} : memref<1x8x8xf32, #tpu.memory_space<vmem>>, vector<1x8x8xf32>,
    %c0_31 = arith.constant 0 : index
    %c0_32 = arith.constant 0 : index
    %c0_33 = arith.constant 0 : index
    %31 = vector.load %arg7[%c0_31, %c0_32, %c0_33] : memref<1x8x1xf32, #tpu.memory_space<vmem>>, vector<1x8x1xf32>
    tpu.vector_store %arg7[%c0_31, %c0_32, %c0_33], %12 {strides = array<i32>} : memref<1x8x1xf32, #tpu.memory_space<vmem>>, vector<1x8x1xf32>,
    %c0_i32_34 = arith.constant 0 : i32
    %32 = arith.cmpi eq, %arg2, %c0_i32_34 : i32
    %33 = arith.extui %32 : i1 to i32
    %c0_i32_35 = arith.constant 0 : i32
    %34 = arith.cmpi ne, %33, %c0_i32_35 : i32
    scf.if %34 {
      %c0_36 = arith.constant 0 : index
      %c0_37 = arith.constant 0 : index
      %c0_38 = arith.constant 0 : index
      %35 = vector.load %arg8[%c0_36, %c0_37, %c0_38] : memref<1x8x1xf32, #tpu.memory_space<vmem>>, vector<1x8x1xf32>
      %36 = tpu.reciprocal %35 {approx = true} : vector<1x8x1xf32> -> vector<1x8x1xf32>
      %c0_39 = arith.constant 0 : index
      %c0_40 = arith.constant 0 : index
      %c0_41 = arith.constant 0 : index
      %37 = vector.load %arg9[%c0_39, %c0_40, %c0_41] : memref<1x8x8xf32, #tpu.memory_space<vmem>>, vector<1x8x8xf32>
      %38 = vector.broadcast %36 : vector<1x8x1xf32> to vector<1x8x8xf32>
      %39 = arith.mulf %37, %38 : vector<1x8x8xf32>
      %c0_42 = arith.constant 0 : index
      %c0_43 = arith.constant 0 : index
      %c0_44 = arith.constant 0 : index
      %40 = vector.load %arg6[%c0_42, %c0_43, %c0_44] : memref<1x8x8xf32, #tpu.memory_space<vmem>>, vector<1x8x8xf32>
      tpu.vector_store %arg6[%c0_42, %c0_43, %c0_44], %39 {strides = array<i32>} : memref<1x8x8xf32, #tpu.memory_space<vmem>>, vector<1x8x8xf32>,
    } else {
    }
    return
  }
  func.func @transform_0(%arg0: i32, %arg1: i32, %arg2: i32) -> (i32, i32, i32) {
    %c0_i32 = arith.constant 0 : i32
    %c0_i32_0 = arith.constant 0 : i32
    return %arg0, %arg1, %c0_i32 : i32, i32, i32
  }
  func.func @transform_1(%arg0: i32, %arg1: i32, %arg2: i32) -> (i32, i32, i32) {
    %c0_i32 = arith.constant 0 : i32
    %c0_i32_0 = arith.constant 0 : i32
    return %arg0, %arg2, %c0_i32 : i32, i32, i32
  }
  func.func @transform_2(%arg0: i32, %arg1: i32, %arg2: i32) -> (i32, i32, i32) {
    %c0_i32 = arith.constant 0 : i32
    %c0_i32_0 = arith.constant 0 : i32
    return %arg0, %arg2, %c0_i32 : i32, i32, i32
  }
  func.func @transform_3(%arg0: i32, %arg1: i32, %arg2: i32) -> (i32, i32, i32) {
    %c0_i32 = arith.constant 0 : i32
    %c0_i32_0 = arith.constant 0 : i32
    return %arg0, %arg1, %c0_i32 : i32, i32, i32
  }
}

module attributes {stable_mosaic.version = 11 : i64} {
  func.func @_linear_fused_kernel(%arg0: i32, %arg1: i32, %arg2: memref<16x32xf32, #tpu.memory_space<vmem>>, %arg3: memref<32x96xf32, #tpu.memory_space<vmem>>, %arg4: memref<1x96xf32, #tpu.memory_space<vmem>>, %arg5: memref<1x32xf32, #tpu.memory_space<vmem>>, %arg6: memref<1x32xf32, #tpu.memory_space<vmem>>, %arg7: memref<16x96xf32, #tpu.memory_space<vmem>>) attributes {dimension_semantics = [#tpu.dimension_semantics<parallel>, #tpu.dimension_semantics<parallel>], iteration_bounds = array<i64: 1, 1>, scalar_prefetch = 0 : i64, scratch_operands = 0 : i64, tpu.core_type = #tpu.core_type<tc>, window_params = [{transform_indices = @transform_0, window_bounds = array<i64: 16, 32>}, {transform_indices = @transform_1, window_bounds = array<i64: 32, 96>}, {transform_indices = @transform_2, window_bounds = array<i64: 1, 96>}, {pipeline_mode = #tpu.pipeline_mode<synchronous>, transform_indices = @transform_3, window_bounds = array<i64: 1, 32>}, {pipeline_mode = #tpu.pipeline_mode<synchronous>, transform_indices = @transform_4, window_bounds = array<i64: 1, 32>}, {transform_indices = @transform_5, window_bounds = array<i64: 16, 96>}]} {
    %c0 = arith.constant 0 : index
    %c0_0 = arith.constant 0 : index
    %0 = vector.load %arg2[%c0, %c0_0] : memref<16x32xf32, #tpu.memory_space<vmem>>, vector<16x32xf32>
    %c0_1 = arith.constant 0 : index
    %c0_2 = arith.constant 0 : index
    %1 = vector.load %arg5[%c0_1, %c0_2] : memref<1x32xf32, #tpu.memory_space<vmem>>, vector<1x32xf32>
    %c0_3 = arith.constant 0 : index
    %c0_4 = arith.constant 0 : index
    %2 = vector.load %arg6[%c0_3, %c0_4] : memref<1x32xf32, #tpu.memory_space<vmem>>, vector<1x32xf32>
    %cst = arith.constant dense<0.000000e+00> : vector<16xf32>
    %3 = vector.multi_reduction <add>, %0, %cst [1] : vector<16x32xf32> to vector<16xf32>
    %4 = vector.shape_cast %3 : vector<16xf32> to vector<16x1xf32>
    %cst_5 = arith.constant 3.200000e+01 : f32
    %5 = vector.broadcast %cst_5 : f32 to vector<16x1xf32>
    %6 = arith.divf %4, %5 : vector<16x1xf32>
    %7 = vector.broadcast %6 : vector<16x1xf32> to vector<16x32xf32>
    %8 = arith.subf %0, %7 : vector<16x32xf32>
    %9 = arith.mulf %8, %8 : vector<16x32xf32>
    %cst_6 = arith.constant dense<0.000000e+00> : vector<16xf32>
    %10 = vector.multi_reduction <add>, %9, %cst_6 [1] : vector<16x32xf32> to vector<16xf32>
    %11 = vector.shape_cast %10 : vector<16xf32> to vector<16x1xf32>
    %cst_7 = arith.constant 3.200000e+01 : f32
    %12 = vector.broadcast %cst_7 : f32 to vector<16x1xf32>
    %13 = arith.divf %11, %12 : vector<16x1xf32>
    %cst_8 = arith.constant 9.99999997E-7 : f32
    %14 = vector.broadcast %cst_8 : f32 to vector<16x1xf32>
    %15 = arith.addf %13, %14 : vector<16x1xf32>
    %16 = math.rsqrt %15 : vector<16x1xf32>
    %17 = vector.broadcast %16 : vector<16x1xf32> to vector<16x32xf32>
    %18 = arith.mulf %8, %17 : vector<16x32xf32>
    %19 = vector.broadcast %1 : vector<1x32xf32> to vector<16x32xf32>
    %20 = arith.mulf %18, %19 : vector<16x32xf32>
    %21 = vector.broadcast %2 : vector<1x32xf32> to vector<16x32xf32>
    %22 = arith.addf %20, %21 : vector<16x32xf32>
    %c0_9 = arith.constant 0 : index
    %c0_10 = arith.constant 0 : index
    %23 = vector.load %arg3[%c0_9, %c0_10] : memref<32x96xf32, #tpu.memory_space<vmem>>, vector<32x96xf32>
    %cst_11 = arith.constant dense<0.000000e+00> : vector<16x96xf32>
    %24 = tpu.matmul %22, %23, %cst_11 {dimension_numbers = #tpu.dot_dimension_numbers<[1], [0], [0], [1], [0, 0, 1, 1], [], []>} : vector<16x32xf32>, vector<32x96xf32>, vector<16x96xf32> -> vector<16x96xf32>
    %c0_12 = arith.constant 0 : index
    %c0_13 = arith.constant 0 : index
    %25 = vector.load %arg4[%c0_12, %c0_13] : memref<1x96xf32, #tpu.memory_space<vmem>>, vector<1x96xf32>
    %26 = vector.broadcast %25 : vector<1x96xf32> to vector<16x96xf32>
    %27 = arith.addf %24, %26 : vector<16x96xf32>
    %c0_14 = arith.constant 0 : index
    %c0_15 = arith.constant 0 : index
    %28 = vector.load %arg7[%c0_14, %c0_15] : memref<16x96xf32, #tpu.memory_space<vmem>>, vector<16x96xf32>
    tpu.vector_store %arg7[%c0_14, %c0_15], %27 {strides = array<i32>} : memref<16x96xf32, #tpu.memory_space<vmem>>, vector<16x96xf32>,
    return
  }
  func.func @transform_0(%arg0: i32, %arg1: i32) -> (i32, i32) {
    %c0_i32 = arith.constant 0 : i32
    %c0_i32_0 = arith.constant 0 : i32
    return %arg0, %c0_i32 : i32, i32
  }
  func.func @transform_1(%arg0: i32, %arg1: i32) -> (i32, i32) {
    %c0_i32 = arith.constant 0 : i32
    %c0_i32_0 = arith.constant 0 : i32
    return %c0_i32, %arg1 : i32, i32
  }
  func.func @transform_2(%arg0: i32, %arg1: i32) -> (i32, i32) {
    %c0_i32 = arith.constant 0 : i32
    %c0_i32_0 = arith.constant 0 : i32
    return %c0_i32, %arg1 : i32, i32
  }
  func.func @transform_3(%arg0: i32, %arg1: i32) -> (i32, i32) {
    %c0_i32 = arith.constant 0 : i32
    %c0_i32_0 = arith.constant 0 : i32
    %c0_i32_1 = arith.constant 0 : i32
    return %c0_i32, %c0_i32_0 : i32, i32
  }
  func.func @transform_4(%arg0: i32, %arg1: i32) -> (i32, i32) {
    %c0_i32 = arith.constant 0 : i32
    %c0_i32_0 = arith.constant 0 : i32
    %c0_i32_1 = arith.constant 0 : i32
    return %c0_i32, %c0_i32_0 : i32, i32
  }
  func.func @transform_5(%arg0: i32, %arg1: i32) -> (i32, i32) {
    %c0_i32 = arith.constant 0 : i32
    return %arg0, %arg1 : i32, i32
  }
}

module attributes {stable_mosaic.version = 11 : i64} {
  func.func @_linear_fused_kernel(%arg0: i32, %arg1: i32, %arg2: memref<16x32xf32, #tpu.memory_space<vmem>>, %arg3: memref<32x32xf32, #tpu.memory_space<vmem>>, %arg4: memref<1x32xf32, #tpu.memory_space<vmem>>, %arg5: memref<16x32xf32, #tpu.memory_space<vmem>>, %arg6: memref<16x32xf32, #tpu.memory_space<vmem>>) attributes {dimension_semantics = [#tpu.dimension_semantics<parallel>, #tpu.dimension_semantics<parallel>], iteration_bounds = array<i64: 1, 1>, scalar_prefetch = 0 : i64, scratch_operands = 0 : i64, tpu.core_type = #tpu.core_type<tc>, window_params = [{transform_indices = @transform_0, window_bounds = array<i64: 16, 32>}, {transform_indices = @transform_1, window_bounds = array<i64: 32, 32>}, {transform_indices = @transform_2, window_bounds = array<i64: 1, 32>}, {transform_indices = @transform_3, window_bounds = array<i64: 16, 32>}, {transform_indices = @transform_4, window_bounds = array<i64: 16, 32>}]} {
    %c0 = arith.constant 0 : index
    %c0_0 = arith.constant 0 : index
    %0 = vector.load %arg2[%c0, %c0_0] : memref<16x32xf32, #tpu.memory_space<vmem>>, vector<16x32xf32>
    %c0_1 = arith.constant 0 : index
    %c0_2 = arith.constant 0 : index
    %1 = vector.load %arg3[%c0_1, %c0_2] : memref<32x32xf32, #tpu.memory_space<vmem>>, vector<32x32xf32>
    %cst = arith.constant dense<0.000000e+00> : vector<16x32xf32>
    %2 = tpu.matmul %0, %1, %cst {dimension_numbers = #tpu.dot_dimension_numbers<[1], [0], [0], [1], [0, 0, 1, 1], [], []>} : vector<16x32xf32>, vector<32x32xf32>, vector<16x32xf32> -> vector<16x32xf32>
    %c0_3 = arith.constant 0 : index
    %c0_4 = arith.constant 0 : index
    %3 = vector.load %arg4[%c0_3, %c0_4] : memref<1x32xf32, #tpu.memory_space<vmem>>, vector<1x32xf32>
    %4 = vector.broadcast %3 : vector<1x32xf32> to vector<16x32xf32>
    %5 = arith.addf %2, %4 : vector<16x32xf32>
    %c0_5 = arith.constant 0 : index
    %c0_6 = arith.constant 0 : index
    %6 = vector.load %arg5[%c0_5, %c0_6] : memref<16x32xf32, #tpu.memory_space<vmem>>, vector<16x32xf32>
    %7 = arith.addf %5, %6 : vector<16x32xf32>
    %c0_7 = arith.constant 0 : index
    %c0_8 = arith.constant 0 : index
    %8 = vector.load %arg6[%c0_7, %c0_8] : memref<16x32xf32, #tpu.memory_space<vmem>>, vector<16x32xf32>
    tpu.vector_store %arg6[%c0_7, %c0_8], %7 {strides = array<i32>} : memref<16x32xf32, #tpu.memory_space<vmem>>, vector<16x32xf32>,
    return
  }
  func.func @transform_0(%arg0: i32, %arg1: i32) -> (i32, i32) {
    %c0_i32 = arith.constant 0 : i32
    %c0_i32_0 = arith.constant 0 : i32
    return %arg0, %c0_i32 : i32, i32
  }
  func.func @transform_1(%arg0: i32, %arg1: i32) -> (i32, i32) {
    %c0_i32 = arith.constant 0 : i32
    %c0_i32_0 = arith.constant 0 : i32
    return %c0_i32, %arg1 : i32, i32
  }
  func.func @transform_2(%arg0: i32, %arg1: i32) -> (i32, i32) {
    %c0_i32 = arith.constant 0 : i32
    %c0_i32_0 = arith.constant 0 : i32
    return %c0_i32, %arg1 : i32, i32
  }
  func.func @transform_3(%arg0: i32, %arg1: i32) -> (i32, i32) {
    %c0_i32 = arith.constant 0 : i32
    return %arg0, %arg1 : i32, i32
  }
  func.func @transform_4(%arg0: i32, %arg1: i32) -> (i32, i32) {
    %c0_i32 = arith.constant 0 : i32
    return %arg0, %arg1 : i32, i32
  }
}

module attributes {stable_mosaic.version = 11 : i64} {
  func.func @_linear_fused_kernel(%arg0: i32, %arg1: i32, %arg2: memref<16x32xf32, #tpu.memory_space<vmem>>, %arg3: memref<32x128xf32, #tpu.memory_space<vmem>>, %arg4: memref<1x128xf32, #tpu.memory_space<vmem>>, %arg5: memref<1x32xf32, #tpu.memory_space<vmem>>, %arg6: memref<1x32xf32, #tpu.memory_space<vmem>>, %arg7: memref<16x128xf32, #tpu.memory_space<vmem>>) attributes {dimension_semantics = [#tpu.dimension_semantics<parallel>, #tpu.dimension_semantics<parallel>], iteration_bounds = array<i64: 1, 1>, scalar_prefetch = 0 : i64, scratch_operands = 0 : i64, tpu.core_type = #tpu.core_type<tc>, window_params = [{transform_indices = @transform_0, window_bounds = array<i64: 16, 32>}, {transform_indices = @transform_1, window_bounds = array<i64: 32, 128>}, {transform_indices = @transform_2, window_bounds = array<i64: 1, 128>}, {pipeline_mode = #tpu.pipeline_mode<synchronous>, transform_indices = @transform_3, window_bounds = array<i64: 1, 32>}, {pipeline_mode = #tpu.pipeline_mode<synchronous>, transform_indices = @transform_4, window_bounds = array<i64: 1, 32>}, {transform_indices = @transform_5, window_bounds = array<i64: 16, 128>}]} {
    %c0 = arith.constant 0 : index
    %c0_0 = arith.constant 0 : index
    %0 = vector.load %arg2[%c0, %c0_0] : memref<16x32xf32, #tpu.memory_space<vmem>>, vector<16x32xf32>
    %c0_1 = arith.constant 0 : index
    %c0_2 = arith.constant 0 : index
    %1 = vector.load %arg5[%c0_1, %c0_2] : memref<1x32xf32, #tpu.memory_space<vmem>>, vector<1x32xf32>
    %c0_3 = arith.constant 0 : index
    %c0_4 = arith.constant 0 : index
    %2 = vector.load %arg6[%c0_3, %c0_4] : memref<1x32xf32, #tpu.memory_space<vmem>>, vector<1x32xf32>
    %cst = arith.constant dense<0.000000e+00> : vector<16xf32>
    %3 = vector.multi_reduction <add>, %0, %cst [1] : vector<16x32xf32> to vector<16xf32>
    %4 = vector.shape_cast %3 : vector<16xf32> to vector<16x1xf32>
    %cst_5 = arith.constant 3.200000e+01 : f32
    %5 = vector.broadcast %cst_5 : f32 to vector<16x1xf32>
    %6 = arith.divf %4, %5 : vector<16x1xf32>
    %7 = vector.broadcast %6 : vector<16x1xf32> to vector<16x32xf32>
    %8 = arith.subf %0, %7 : vector<16x32xf32>
    %9 = arith.mulf %8, %8 : vector<16x32xf32>
    %cst_6 = arith.constant dense<0.000000e+00> : vector<16xf32>
    %10 = vector.multi_reduction <add>, %9, %cst_6 [1] : vector<16x32xf32> to vector<16xf32>
    %11 = vector.shape_cast %10 : vector<16xf32> to vector<16x1xf32>
    %cst_7 = arith.constant 3.200000e+01 : f32
    %12 = vector.broadcast %cst_7 : f32 to vector<16x1xf32>
    %13 = arith.divf %11, %12 : vector<16x1xf32>
    %cst_8 = arith.constant 9.99999997E-7 : f32
    %14 = vector.broadcast %cst_8 : f32 to vector<16x1xf32>
    %15 = arith.addf %13, %14 : vector<16x1xf32>
    %16 = math.rsqrt %15 : vector<16x1xf32>
    %17 = vector.broadcast %16 : vector<16x1xf32> to vector<16x32xf32>
    %18 = arith.mulf %8, %17 : vector<16x32xf32>
    %19 = vector.broadcast %1 : vector<1x32xf32> to vector<16x32xf32>
    %20 = arith.mulf %18, %19 : vector<16x32xf32>
    %21 = vector.broadcast %2 : vector<1x32xf32> to vector<16x32xf32>
    %22 = arith.addf %20, %21 : vector<16x32xf32>
    %c0_9 = arith.constant 0 : index
    %c0_10 = arith.constant 0 : index
    %23 = vector.load %arg3[%c0_9, %c0_10] : memref<32x128xf32, #tpu.memory_space<vmem>>, vector<32x128xf32>
    %cst_11 = arith.constant dense<0.000000e+00> : vector<16x128xf32>
    %24 = tpu.matmul %22, %23, %cst_11 {dimension_numbers = #tpu.dot_dimension_numbers<[1], [0], [0], [1], [0, 0, 1, 1], [], []>} : vector<16x32xf32>, vector<32x128xf32>, vector<16x128xf32> -> vector<16x128xf32>
    %c0_12 = arith.constant 0 : index
    %c0_13 = arith.constant 0 : index
    %25 = vector.load %arg4[%c0_12, %c0_13] : memref<1x128xf32, #tpu.memory_space<vmem>>, vector<1x128xf32>
    %26 = vector.broadcast %25 : vector<1x128xf32> to vector<16x128xf32>
    %27 = arith.addf %24, %26 : vector<16x128xf32>
    %cst_14 = arith.constant 5.000000e-01 : f32
    %28 = vector.broadcast %cst_14 : f32 to vector<16x128xf32>
    %29 = arith.mulf %28, %27 : vector<16x128xf32>
    %cst_15 = arith.constant 0.707106769 : f32
    %30 = vector.broadcast %cst_15 : f32 to vector<16x128xf32>
    %31 = arith.mulf %27, %30 : vector<16x128xf32>
    %cst_16 = arith.constant 0.000000e+00 : f32
    %32 = vector.broadcast %cst_16 : f32 to vector<16x128xf32>
    %33 = arith.cmpf oge, %31, %32 : vector<16x128xf32>
    %cst_17 = arith.constant 1.000000e+00 : f32
    %cst_18 = arith.constant -1.000000e+00 : f32
    %34 = vector.broadcast %cst_17 : f32 to vector<16x128xf32>
    %35 = vector.broadcast %cst_18 : f32 to vector<16x128xf32>
    %36 = arith.select %33, %34, %35 : vector<16x128xi1>, vector<16x128xf32>
    %37 = math.absf %31 : vector<16x128xf32>
    %cst_19 = arith.constant 0.327591091 : f32
    %38 = vector.broadcast %cst_19 : f32 to vector<16x128xf32>
    %39 = arith.mulf %38, %37 : vector<16x128xf32>
    %cst_20 = arith.constant 1.000000e+00 : f32
    %40 = vector.broadcast %cst_20 : f32 to vector<16x128xf32>
    %41 = arith.addf %40, %39 : vector<16x128xf32>
    %cst_21 = arith.constant 1.000000e+00 : f32
    %42 = vector.broadcast %cst_21 : f32 to vector<16x128xf32>
    %43 = arith.divf %42, %41 : vector<16x128xf32>
    %cst_22 = arith.constant 1.06140542 : f32
    %44 = vector.broadcast %cst_22 : f32 to vector<16x128xf32>
    %45 = arith.mulf %44, %43 : vector<16x128xf32>
    %cst_23 = arith.constant -1.45315206 : f32
    %46 = vector.broadcast %cst_23 : f32 to vector<16x128xf32>
    %47 = arith.addf %45, %46 : vector<16x128xf32>
    %48 = arith.mulf %47, %43 : vector<16x128xf32>
    %cst_24 = arith.constant 1.42141378 : f32
    %49 = vector.broadcast %cst_24 : f32 to vector<16x128xf32>
    %50 = arith.addf %48, %49 : vector<16x128xf32>
    %51 = arith.mulf %50, %43 : vector<16x128xf32>
    %cst_25 = arith.constant -0.284496725 : f32
    %52 = vector.broadcast %cst_25 : f32 to vector<16x128xf32>
    %53 = arith.addf %51, %52 : vector<16x128xf32>
    %54 = arith.mulf %53, %43 : vector<16x128xf32>
    %cst_26 = arith.constant 0.254829586 : f32
    %55 = vector.broadcast %cst_26 : f32 to vector<16x128xf32>
    %56 = arith.addf %54, %55 : vector<16x128xf32>
    %57 = arith.mulf %56, %43 : vector<16x128xf32>
    %cst_27 = arith.constant 0.000000e+00 : f32
    %58 = vector.broadcast %cst_27 : f32 to vector<16x128xf32>
    %59 = arith.subf %58, %37 : vector<16x128xf32>
    %60 = arith.mulf %59, %37 : vector<16x128xf32>
    %61 = math.exp %60 : vector<16x128xf32>
    %62 = arith.mulf %57, %61 : vector<16x128xf32>
    %cst_28 = arith.constant 1.000000e+00 : f32
    %63 = vector.broadcast %cst_28 : f32 to vector<16x128xf32>
    %64 = arith.subf %63, %62 : vector<16x128xf32>
    %65 = arith.mulf %36, %64 : vector<16x128xf32>
    %cst_29 = arith.constant 1.000000e+00 : f32
    %66 = vector.broadcast %cst_29 : f32 to vector<16x128xf32>
    %67 = arith.addf %66, %65 : vector<16x128xf32>
    %68 = arith.mulf %29, %67 : vector<16x128xf32>
    %c0_30 = arith.constant 0 : index
    %c0_31 = arith.constant 0 : index
    %69 = vector.load %arg7[%c0_30, %c0_31] : memref<16x128xf32, #tpu.memory_space<vmem>>, vector<16x128xf32>
    tpu.vector_store %arg7[%c0_30, %c0_31], %68 {strides = array<i32>} : memref<16x128xf32, #tpu.memory_space<vmem>>, vector<16x128xf32>,
    return
  }
  func.func @transform_0(%arg0: i32, %arg1: i32) -> (i32, i32) {
    %c0_i32 = arith.constant 0 : i32
    %c0_i32_0 = arith.constant 0 : i32
    return %arg0, %c0_i32 : i32, i32
  }
  func.func @transform_1(%arg0: i32, %arg1: i32) -> (i32, i32) {
    %c0_i32 = arith.constant 0 : i32
    %c0_i32_0 = arith.constant 0 : i32
    return %c0_i32, %arg1 : i32, i32
  }
  func.func @transform_2(%arg0: i32, %arg1: i32) -> (i32, i32) {
    %c0_i32 = arith.constant 0 : i32
    %c0_i32_0 = arith.constant 0 : i32
    return %c0_i32, %arg1 : i32, i32
  }
  func.func @transform_3(%arg0: i32, %arg1: i32) -> (i32, i32) {
    %c0_i32 = arith.constant 0 : i32
    %c0_i32_0 = arith.constant 0 : i32
    %c0_i32_1 = arith.constant 0 : i32
    return %c0_i32, %c0_i32_0 : i32, i32
  }
  func.func @transform_4(%arg0: i32, %arg1: i32) -> (i32, i32) {
    %c0_i32 = arith.constant 0 : i32
    %c0_i32_0 = arith.constant 0 : i32
    %c0_i32_1 = arith.constant 0 : i32
    return %c0_i32, %c0_i32_0 : i32, i32
  }
  func.func @transform_5(%arg0: i32, %arg1: i32) -> (i32, i32) {
    %c0_i32 = arith.constant 0 : i32
    return %arg0, %arg1 : i32, i32
  }
}

module attributes {stable_mosaic.version = 11 : i64} {
  func.func @_linear_fused_kernel(%arg0: i32, %arg1: i32, %arg2: memref<16x128xf32, #tpu.memory_space<vmem>>, %arg3: memref<128x32xf32, #tpu.memory_space<vmem>>, %arg4: memref<1x32xf32, #tpu.memory_space<vmem>>, %arg5: memref<16x32xf32, #tpu.memory_space<vmem>>, %arg6: memref<16x32xf32, #tpu.memory_space<vmem>>) attributes {dimension_semantics = [#tpu.dimension_semantics<parallel>, #tpu.dimension_semantics<parallel>], iteration_bounds = array<i64: 1, 1>, scalar_prefetch = 0 : i64, scratch_operands = 0 : i64, tpu.core_type = #tpu.core_type<tc>, window_params = [{transform_indices = @transform_0, window_bounds = array<i64: 16, 128>}, {transform_indices = @transform_1, window_bounds = array<i64: 128, 32>}, {transform_indices = @transform_2, window_bounds = array<i64: 1, 32>}, {transform_indices = @transform_3, window_bounds = array<i64: 16, 32>}, {transform_indices = @transform_4, window_bounds = array<i64: 16, 32>}]} {
    %c0 = arith.constant 0 : index
    %c0_0 = arith.constant 0 : index
    %0 = vector.load %arg2[%c0, %c0_0] : memref<16x128xf32, #tpu.memory_space<vmem>>, vector<16x128xf32>
    %c0_1 = arith.constant 0 : index
    %c0_2 = arith.constant 0 : index
    %1 = vector.load %arg3[%c0_1, %c0_2] : memref<128x32xf32, #tpu.memory_space<vmem>>, vector<128x32xf32>
    %cst = arith.constant dense<0.000000e+00> : vector<16x32xf32>
    %2 = tpu.matmul %0, %1, %cst {dimension_numbers = #tpu.dot_dimension_numbers<[1], [0], [0], [1], [0, 0, 1, 1], [], []>} : vector<16x128xf32>, vector<128x32xf32>, vector<16x32xf32> -> vector<16x32xf32>
    %c0_3 = arith.constant 0 : index
    %c0_4 = arith.constant 0 : index
    %3 = vector.load %arg4[%c0_3, %c0_4] : memref<1x32xf32, #tpu.memory_space<vmem>>, vector<1x32xf32>
    %4 = vector.broadcast %3 : vector<1x32xf32> to vector<16x32xf32>
    %5 = arith.addf %2, %4 : vector<16x32xf32>
    %c0_5 = arith.constant 0 : index
    %c0_6 = arith.constant 0 : index
    %6 = vector.load %arg5[%c0_5, %c0_6] : memref<16x32xf32, #tpu.memory_space<vmem>>, vector<16x32xf32>
    %7 = arith.addf %5, %6 : vector<16x32xf32>
    %c0_7 = arith.constant 0 : index
    %c0_8 = arith.constant 0 : index
    %8 = vector.load %arg6[%c0_7, %c0_8] : memref<16x32xf32, #tpu.memory_space<vmem>>, vector<16x32xf32>
    tpu.vector_store %arg6[%c0_7, %c0_8], %7 {strides = array<i32>} : memref<16x32xf32, #tpu.memory_space<vmem>>, vector<16x32xf32>,
    return
  }
  func.func @transform_0(%arg0: i32, %arg1: i32) -> (i32, i32) {
    %c0_i32 = arith.constant 0 : i32
    %c0_i32_0 = arith.constant 0 : i32
    return %arg0, %c0_i32 : i32, i32
  }
  func.func @transform_1(%arg0: i32, %arg1: i32) -> (i32, i32) {
    %c0_i32 = arith.constant 0 : i32
    %c0_i32_0 = arith.constant 0 : i32
    return %c0_i32, %arg1 : i32, i32
  }
  func.func @transform_2(%arg0: i32, %arg1: i32) -> (i32, i32) {
    %c0_i32 = arith.constant 0 : i32
    %c0_i32_0 = arith.constant 0 : i32
    return %c0_i32, %arg1 : i32, i32
  }
  func.func @transform_3(%arg0: i32, %arg1: i32) -> (i32, i32) {
    %c0_i32 = arith.constant 0 : i32
    return %arg0, %arg1 : i32, i32
  }
  func.func @transform_4(%arg0: i32, %arg1: i32) -> (i32, i32) {
    %c0_i32 = arith.constant 0 : i32
    return %arg0, %arg1 : i32, i32
  }
}

</mosaic_0001>

<llo_original>
// kernel: eva_block_forward.7
$region0: #{eva_block_forward.7}
  #allocation0 [shape = 'u32[]', space=smem, size = 0x4, offset = 0x4, fixed_abs, tag = 'smem constant byte address 0x4 - core index']
  #allocation1 [shape = 'u32[72,128]{1,0:T(1,128)}', space=vmem, size = 0x9000, scoped, tag = 'internal scratch']
  %s0 = inlined_call_operand.vmem [shape: f32[16,32], index: 0, kind: input, shape index: {}]
  %s1 = inlined_call_operand.vmem [shape: f32[32,32], index: 1, kind: input, shape index: {}]
  %s2 = inlined_call_operand.vmem [shape: f32[1,32], index: 2, kind: input, shape index: {}]
  %s3 = inlined_call_operand.vmem [shape: f32[16,32], index: 3, kind: input, shape index: {}]
  %s4 = inlined_call_operand.vmem [shape: f32[16,32], index: 4, kind: output, shape index: {}]
  %s5 = sld [smem:[#allocation0]]
  $region26: #{eva_block_forward.7} parent=0
    _
  %s7 = ssub.s32 1, %s5
  %s8 = scalar_select 0, %s7, %s5
  // Predicated region
  $region2: #{eva_block_forward.7} parent=0 // pred_check
    _
  $region3: #{eva_block_forward.7} parent=0 // pred_check_branch
    %10 = sbr.rel (0) target = $region5
  $region4: #{eva_block_forward.7} parent=0 // pred_region
    _
  $region5: #{eva_block_forward.7} parent=0 // pred_fallthru
    _
  // Predicated region
  $region6: #{eva_block_forward.7} parent=0 // pred_check
    _
  $region7: #{eva_block_forward.7} parent=0 // pred_check_branch
    %12 = sbr.rel (0) target = $region9
  $region8: #{eva_block_forward.7} parent=0 // pred_region
    _
  $region9: #{eva_block_forward.7} parent=0 // pred_fallthru
    _
  // Predicated region
  $region10: #{eva_block_forward.7} parent=0 // pred_check
    _
  $region11: #{eva_block_forward.7} parent=0 // pred_check_branch
    %14 = sbr.rel (0) target = $region13
  $region12: #{eva_block_forward.7} parent=0 // pred_region
    _
  $region13: #{eva_block_forward.7} parent=0 // pred_fallthru
    _
  // Predicated region
  $region14: #{eva_block_forward.7} parent=0 // pred_check
    _
  $region15: #{eva_block_forward.7} parent=0 // pred_check_branch
    %16 = sbr.rel (0) target = $region17
  $region16: #{eva_block_forward.7} parent=0 // pred_region
    _
  $region17: #{eva_block_forward.7} parent=0 // pred_fallthru
    _
  %v17 = vld [vmem:[%s0] sm:$0xff]
  %v18 = vld [vmem:[%s0 + $0x8] sm:$0xff]
  %v19 = vld [vmem:[%s1] sm:$0xff]
  %v20 = vld [vmem:[%s1 + $0x8] sm:$0xff]
  %v21 = vld [vmem:[%s1 + $0x10] sm:$0xff]
  %v22 = vld [vmem:[%s1 + $0x18] sm:$0xff]
  %v23 = vld [vmem:[%s2] sm:$0x1]
  %v25 = vperm.slane %v23, 0
  %vm27 = vcmask 261120
  %v29 = vsel %vm27, %v17, 0
  %v32 = vsel %vm27, %v18, 0
  %34 = vmatpush.msra.mxu0 0.0
  %35 = vmatpush.msra.mxu0 0.0
  %36 = vmatpush.msra.mxu0 0.0
  %37 = vmatpush.msra.mxu0 0.0
  %38 = vmatpush.msra.mxu0 0.0
  %39 = vmatpush.msra.mxu0 0.0
  %40 = vmatpush.msra.mxu0 0.0
  %41 = vmatpush.msra.mxu0 0.0
  %42 = vmatpush.msra.mxu0 0.0
  %43 = vmatpush.msra.mxu0 0.0
  %44 = vmatpush.msra.mxu0 0.0
  %45 = vmatpush.msra.mxu0 0.0
  %46 = vmatpush.msra.mxu0 %v22
  %47 = vmatpush.msra.mxu0 %v21
  %48 = vmatpush.msra.mxu0 %v20
  %49 = vmatpush.msra.mxu0 %v19
  %50 = vmatmul.f32.gmra.mxu0 %v29
  %v51 = vpop.f32.mrf.mxu0
  %v52 = vadd.f32 %v25, %v51
  %53 = vmatmul.f32.gmra.mxu0 %v32
  %v54 = vpop.f32.mrf.mxu0
  %v55 = vadd.f32 %v25, %v54
  %56 = vdwg.mxu0
  %v57 = vld [vmem:[%s3] sm:$0xff]
  %v58 = vld [vmem:[%s3 + $0x8] sm:$0xff]
  %v59 = vadd.f32 %v52, %v57
  %v60 = vadd.f32 %v55, %v58
  %61 = vst.msk [vmem:[%s4] sm:$0xff] %vm27, %v59
  %62 = vst.msk [vmem:[%s4 + $0x8] sm:$0xff] %vm27, %v60
  // Predicated region
  $region18: #{eva_block_forward.7} parent=0 // pred_check
    _
  $region19: #{eva_block_forward.7} parent=0 // pred_check_branch
    %64 = sbr.rel (0) target = $region21
  $region20: #{eva_block_forward.7} parent=0 // pred_region
    _
  $region21: #{eva_block_forward.7} parent=0 // pred_fallthru
    _
  // Predicated region
  $region22: #{eva_block_forward.7} parent=0 // pred_check
    _
  $region23: #{eva_block_forward.7} parent=0 // pred_check_branch
    %66 = sbr.rel (0) target = $region25
  $region24: #{eva_block_forward.7} parent=0 // pred_region
    _
  $region25: #{eva_block_forward.7} parent=0 // pred_fallthru
    _

// kernel: eva_block_forward.6
$region0: #{eva_block_forward.6}
  #allocation0 [shape = 'u32[]', space=smem, size = 0x4, offset = 0x4, fixed_abs, tag = 'smem constant byte address 0x4 - core index']
  #allocation1 [shape = 'u32[72,128]{1,0:T(1,128)}', space=vmem, size = 0x9000, scoped, tag = 'internal scratch']
  #allocation2 [shape = 'f32[1,8,1]{2,1,0:T(8,128)}', space=vmem, size = 0x1000, scoped, tag = 'scratch operand']
  #allocation3 [shape = 'f32[1,8,1]{2,1,0:T(8,128)}', space=vmem, size = 0x1000, scoped, tag = 'scratch operand']
  #allocation4 [shape = 'f32[1,8,8]{2,1,0:T(8,128)}', space=vmem, size = 0x1000, scoped, tag = 'scratch operand']
  %s0 = inlined_call_operand.vmem [shape: f32[8,8,8], index: 0, kind: input, shape index: {}]
  %s1 = inlined_call_operand.vmem [shape: f32[8,8,8], index: 1, kind: input, shape index: {}]
  %s2 = inlined_call_operand.vmem [shape: f32[8,8,8], index: 2, kind: input, shape index: {}]
  %s3 = inlined_call_operand.vmem [shape: f32[8,8,8], index: 3, kind: output, shape index: {}]
  %s4 = sld [smem:[#allocation0]]
  $region53: #{eva_block_forward.6} parent=0
    _
  %s6 = ssub.s32 1, %s4
  %s7 = scalar_select 0, %s6, %s4
  loop: start=0, step=1, limit=10
  $region2: #{eva_block_forward.6} parent=0 // loop_pre_header
    _
  $region3: #{eva_block_forward.6} parent=0 // loop_header
    %s9 = sphi 0, %s13
    %p10 = scmp.ge.s32.totalorder %s9, 10
    %s16 = sphi 0, %s35
    %s17 = sphi 0, %s31
    %s18 = sphi 0, %s27
    %s19 = sphi 0, %s16
    %s20 = sphi 0, %s17
    %s21 = sphi 0, %s18
    %s22 = sphi 0, %s19
    %s23 = sphi 0, %s20
    %s24 = sphi 0, %s21
    %s40 = sphi 0, %s42
    %s43 = sphi 0, %s40
    %s44 = sphi 0, %s43
    %s60 = sphi 0, %s44
    %s68 = sphi 0, %s70
    %s71 = sphi 0, %s68
    %s72 = sphi 0, %s71
    %s88 = sphi 0, %s72
    %s96 = sphi 0, %s98
    %s99 = sphi 0, %s96
    %s100 = sphi 0, %s99
    %s116 = sphi 0, %s100
    %s124 = sphi 0, %s126
    %s127 = sphi 0, %s124
    %s128 = sphi 0, %s127
    %s144 = sphi 0, %s128
  $region4: #{eva_block_forward.6} parent=0 // loop_header_branch
    %12 = sbr.rel (%p10) target = $region8
  $region5: #{eva_block_forward.6} parent=0 // loop_body
    %s14 = ssub.s32 %s9, 1
    %s15 = ssub.s32 %s9, 2
    %s25 = sadd.s32 1, %s18
    %p26 = scmp.ge.s32.totalorder %s25, 1
    %s27 = scalar_select %p26, 0, %s25
    %s28 = sadd.s32 1, %s17
    %s29 = scalar_select %p26, %s28, %s17
    %p30 = scmp.ge.s32.totalorder %s29, 1
    %s31 = scalar_select %p30, 0, %s29
    %s32 = sadd.s32 1, %s16
    %s33 = scalar_select %p30, %s32, %s16
    %p34 = scmp.ge.s32.totalorder %s33, 8
    %s35 = scalar_select %p34, 0, %s33
    %s36 = ssub.s32 %s16, %s35
    %s37 = ssub.s32 %s17, %s31
    %s38 = sor.u32 %s36, %s37
    %p39 = scmp.eq.s32.totalorder %s38, 0
    %s41 = sadd.s32 %s40, 1
    %s42 = scalar_select %p39, %s40, %s41
    %p45 = pneg %p39
    %p46 = scmp.eq.s32.totalorder %s9, 7
    %p47 = por %p45, %p46
    %p48 = scmp.ne.s32.totalorder %s40, %s43
    %p49 = scmp.eq.s32.totalorder %s9, 0
    %p50 = por %p48, %p49
    %p51 = scmp.ne.s32.totalorder %s40, %s43
    %p52 = scmp.eq.s32.totalorder %s14, 7
    %p53 = por %p51, %p52
    %p54 = scmp.ne.s32.totalorder %s43, %s44
    %p55 = scmp.eq.s32.totalorder %s14, 0
    %p56 = por %p54, %p55
    %p57 = scmp.ne.s32.totalorder %s43, %s44
    %p58 = scmp.eq.s32.totalorder %s15, 7
    %p59 = por %p57, %p58
    %p61 = scmp.ne.s32.totalorder %s44, %s60
    %p62 = scmp.eq.s32.totalorder %s15, 0
    %p63 = por %p61, %p62
    %s64 = ssub.s32 %s16, %s35
    %s65 = ssub.s32 %s18, %s27
    %s66 = sor.u32 %s64, %s65
    %p67 = scmp.eq.s32.totalorder %s66, 0
    %s69 = sadd.s32 %s68, 1
    %s70 = scalar_select %p67, %s68, %s69
    %p73 = pneg %p67
    %p74 = scmp.eq.s32.totalorder %s9, 7
    %p75 = por %p73, %p74
    %p76 = scmp.ne.s32.totalorder %s68, %s71
    %p77 = scmp.eq.s32.totalorder %s9, 0
    %p78 = por %p76, %p77
    %p79 = scmp.ne.s32.totalorder %s68, %s71
    %p80 = scmp.eq.s32.totalorder %s14, 7
    %p81 = por %p79, %p80
    %p82 = scmp.ne.s32.totalorder %s71, %s72
    %p83 = scmp.eq.s32.totalorder %s14, 0
    %p84 = por %p82, %p83
    %p85 = scmp.ne.s32.totalorder %s71, %s72
    %p86 = scmp.eq.s32.totalorder %s15, 7
    %p87 = por %p85, %p86
    %p89 = scmp.ne.s32.totalorder %s72, %s88
    %p90 = scmp.eq.s32.totalorder %s15, 0
    %p91 = por %p89, %p90
    %s92 = ssub.s32 %s16, %s35
    %s93 = ssub.s32 %s18, %s27
    %s94 = sor.u32 %s92, %s93
    %p95 = scmp.eq.s32.totalorder %s94, 0
    %s97 = sadd.s32 %s96, 1
    %s98 = scalar_select %p95, %s96, %s97
    %p101 = pneg %p95
    %p102 = scmp.eq.s32.totalorder %s9, 7
    %p103 = por %p101, %p102
    %p104 = scmp.ne.s32.totalorder %s96, %s99
    %p105 = scmp.eq.s32.totalorder %s9, 0
    %p106 = por %p104, %p105
    %p107 = scmp.ne.s32.totalorder %s96, %s99
    %p108 = scmp.eq.s32.totalorder %s14, 7
    %p109 = por %p107, %p108
    %p110 = scmp.ne.s32.totalorder %s99, %s100
    %p111 = scmp.eq.s32.totalorder %s14, 0
    %p112 = por %p110, %p111
    %p113 = scmp.ne.s32.totalorder %s99, %s100
    %p114 = scmp.eq.s32.totalorder %s15, 7
    %p115 = por %p113, %p114
    %p117 = scmp.ne.s32.totalorder %s100, %s116
    %p118 = scmp.eq.s32.totalorder %s15, 0
    %p119 = por %p117, %p118
    %s120 = ssub.s32 %s16, %s35
    %s121 = ssub.s32 %s17, %s31
    %s122 = sor.u32 %s120, %s121
    %p123 = scmp.eq.s32.totalorder %s122, 0
    %s125 = sadd.s32 %s124, 1
    %s126 = scalar_select %p123, %s124, %s125
    %p129 = pneg %p123
    %p130 = scmp.eq.s32.totalorder %s9, 7
    %p131 = por %p129, %p130
    %p132 = scmp.ne.s32.totalorder %s124, %s127
    %p133 = scmp.eq.s32.totalorder %s9, 0
    %p134 = por %p132, %p133
    %p135 = scmp.ne.s32.totalorder %s124, %s127
    %p136 = scmp.eq.s32.totalorder %s14, 7
    %p137 = por %p135, %p136
    %p138 = scmp.ne.s32.totalorder %s127, %s128
    %p139 = scmp.eq.s32.totalorder %s14, 0
    %p140 = por %p138, %p139
    %p141 = scmp.ne.s32.totalorder %s127, %s128
    %p142 = scmp.eq.s32.totalorder %s15, 7
    %p143 = por %p141, %p142
    %p145 = scmp.ne.s32.totalorder %s128, %s144
    %p146 = scmp.eq.s32.totalorder %s15, 0
    %p147 = por %p145, %p146
    %p148 = scmp.le.s32.totalorder 1, %s9
    %p149 = scmp.lt.s32.totalorder %s9, 9
    %p150 = pnand %p148, %p149
    %p151 = pneg %p150
    // Predicated region
    $region9: #{eva_block_forward.6} parent=5 // pred_check
      _
    $region10: #{eva_block_forward.6} parent=5 // pred_check_branch
      %153 = sbr.rel (%p150) target = $region12
    $region11: #{eva_block_forward.6} parent=5 // pred_region
      %s154 = ssub.s32 %s9, 1
    $region12: #{eva_block_forward.6} parent=5 // pred_fallthru
      _
    %p155 = scmp.lt.s32.totalorder %s9, 8
    // Predicated region
    $region13: #{eva_block_forward.6} parent=5 // pred_check
      %p156 = pneg %p155
    $region14: #{eva_block_forward.6} parent=5 // pred_check_branch
      %158 = sbr.rel (%p156) target = $region16
    $region15: #{eva_block_forward.6} parent=5 // pred_region
      // Predicated region
      $region17: #{eva_block_forward.6} parent=15 // pred_check
        %p159 = pneg %p50
      $region18: #{eva_block_forward.6} parent=15 // pred_check_branch
        %161 = sbr.rel (%p159) target = $region20
      $region19: #{eva_block_forward.6} parent=15 // pred_region
        %p162 = scmp.lt.s32.totalorder %s16, 7
        %s163 = scalar_select %p162, %s16, 7
        %p164 = scmp.lt.s32.totalorder %s17, 0
        %s165 = scalar_select %p164, %s17, 0
        %s166 = sadd.s32 %s165, %s163
        %s167 = smul.addr %s166, 8
        %s168 = scalar_lea.vmem %s0, %s167
      $region20: #{eva_block_forward.6} parent=15 // pred_fallthru
        _
      // Predicated region
      $region21: #{eva_block_forward.6} parent=15 // pred_check
        %p169 = pneg %p78
      $region22: #{eva_block_forward.6} parent=15 // pred_check_branch
        %171 = sbr.rel (%p169) target = $region24
      $region23: #{eva_block_forward.6} parent=15 // pred_region
        %p172 = scmp.lt.s32.totalorder %s16, 7
        %s173 = scalar_select %p172, %s16, 7
        %p174 = scmp.lt.s32.totalorder %s18, 0
        %s175 = scalar_select %p174, %s18, 0
        %s176 = sadd.s32 %s175, %s173
        %s177 = smul.addr %s176, 8
        %s178 = scalar_lea.vmem %s1, %s177
      $region24: #{eva_block_forward.6} parent=15 // pred_fallthru
        _
      // Predicated region
      $region25: #{eva_block_forward.6} parent=15 // pred_check
        %p179 = pneg %p106
      $region26: #{eva_block_forward.6} parent=15 // pred_check_branch
        %181 = sbr.rel (%p179) target = $region28
      $region27: #{eva_block_forward.6} parent=15 // pred_region
        %p182 = scmp.lt.s32.totalorder %s16, 7
        %s183 = scalar_select %p182, %s16, 7
        %p184 = scmp.lt.s32.totalorder %s18, 0
        %s185 = scalar_select %p184, %s18, 0
        %s186 = sadd.s32 %s185, %s183
        %s187 = smul.addr %s186, 8
        %s188 = scalar_lea.vmem %s2, %s187
      $region28: #{eva_block_forward.6} parent=15 // pred_fallthru
        _
    $region16: #{eva_block_forward.6} parent=5 // pred_fallthru
      _
    %p189 = scmp.le.s32.totalorder 1, %s9
    %p190 = scmp.lt.s32.totalorder %s9, 9
    %p191 = pnand %p189, %p190
    %p192 = pneg %p191
    // Predicated region
    $region29: #{eva_block_forward.6} parent=5 // pred_check
      _
    $region30: #{eva_block_forward.6} parent=5 // pred_check_branch
      %194 = sbr.rel (%p191) target = $region32
    $region31: #{eva_block_forward.6} parent=5 // pred_region
      %s195 = ssub.s32 %s9, 1
      %p196 = scmp.lt.s32.totalorder %s19, 7
      %s197 = scalar_select %p196, %s19, 7
      %p198 = scmp.lt.s32.totalorder %s20, 0
      %s199 = scalar_select %p198, %s20, 0
      %s200 = sadd.s32 %s199, %s197
      %s201 = smul.addr %s200, 8
      %s202 = scalar_lea.vmem %s0, %s201
      %p203 = pneg %p56
      %p204 = pneg %p53
      %p205 = scmp.lt.s32.totalorder %s19, 7
      %s206 = scalar_select %p205, %s19, 7
      %p207 = scmp.lt.s32.totalorder %s21, 0
      %s208 = scalar_select %p207, %s21, 0
      %s209 = sadd.s32 %s208, %s206
      %s210 = smul.addr %s209, 8
      %s211 = scalar_lea.vmem %s1, %s210
      %p212 = pneg %p84
      %p213 = pneg %p81
      %p214 = scmp.lt.s32.totalorder %s19, 7
      %s215 = scalar_select %p214, %s19, 7
      %p216 = scmp.lt.s32.totalorder %s21, 0
      %s217 = scalar_select %p216, %s21, 0
      %s218 = sadd.s32 %s217, %s215
      %s219 = smul.addr %s218, 8
      %s220 = scalar_lea.vmem %s2, %s219
      %p221 = pneg %p112
      %p222 = pneg %p109
      %p223 = pneg %p140
      %p224 = pneg %p137
      %p225 = scmp.lt.s32.totalorder %s19, 7
      %s226 = scalar_select %p225, %s19, 7
      %p227 = scmp.lt.s32.totalorder %s20, 0
      %s228 = scalar_select %p227, %s20, 0
      %s229 = sadd.s32 %s228, %s226
      %s230 = smul.addr %s229, 8
      %s231 = scalar_lea.vmem %s3, %s230
      %p232 = scmp.lt.s32.totalorder %s19, 7
      %s233 = scalar_select %p232, %s19, 7
      %p234 = scmp.lt.s32.totalorder %s20, 0
      %s235 = scalar_select %p234, %s20, 0
      %s236 = sadd.s32 %s235, %s233
      %s237 = smul.addr %s236, 8
      %s238 = scalar_lea.vmem %s0, %s237
      %p239 = scmp.lt.s32.totalorder %s19, 7
      %s240 = scalar_select %p239, %s19, 7
      %p241 = scmp.lt.s32.totalorder %s21, 0
      %s242 = scalar_select %p241, %s21, 0
      %s243 = sadd.s32 %s242, %s240
      %s244 = smul.addr %s243, 8
      %s245 = scalar_lea.vmem %s1, %s244
      %p246 = scmp.lt.s32.totalorder %s19, 7
      %s247 = scalar_select %p246, %s19, 7
      %p248 = scmp.lt.s32.totalorder %s21, 0
      %s249 = scalar_select %p248, %s21, 0
      %s250 = sadd.s32 %s249, %s247
      %s251 = smul.addr %s250, 8
      %s252 = scalar_lea.vmem %s2, %s251
      %p253 = scmp.lt.s32.totalorder %s19, 7
      %s254 = scalar_select %p253, %s19, 7
      %p255 = scmp.lt.s32.totalorder %s20, 0
      %s256 = scalar_select %p255, %s20, 0
      %s257 = sadd.s32 %s256, %s254
      %s258 = smul.addr %s257, 8
      %s259 = scalar_lea.vmem %s3, %s258
      %p260 = scmp.eq.s32.totalorder %s21, 0
      // Predicated region
      $region33: #{eva_block_forward.6} parent=31 // pred_check
        %p261 = pneg %p260
      $region34: #{eva_block_forward.6} parent=31 // pred_check_branch
        %263 = sbr.rel (%p261) target = $region36
      $region35: #{eva_block_forward.6} parent=31 // pred_region
        %vm264 = vcmask 7168
        %265 = vst.msk [vmem:[#allocation2] sm:$0xff] %vm264, -inf
        %266 = vst.msk [vmem:[#allocation3] sm:$0xff] %vm264, 0.0
        %vm267 = vcmask 64512
        %268 = vst.msk [vmem:[#allocation4] sm:$0xff] %vm267, 0.0
      $region36: #{eva_block_forward.6} parent=31 // pred_fallthru
        _
      %v269 = vld [vmem:[%s238] sm:$0xff]
      %v270 = vmul.f32 %v269, 0.35355338
      %v271 = vld [vmem:[%s245] sm:$0xff]
      %v272 = vld [vmem:[%s252] sm:$0xff]
      %vm273 = vcmask 64512
      %v275 = vsel %vm273, %v270, 0
      %v278 = vsel %vm273, %v271, 0
      %280 = vmatpush.xpose.msra.mxu0 0.0
      %281 = vmatpush.xpose.msra.mxu0 0.0
      %282 = vmatpush.xpose.msra.mxu0 0.0
      %283 = vmatpush.xpose.msra.mxu0 0.0
      %284 = vmatpush.xpose.msra.mxu0 0.0
      %285 = vmatpush.xpose.msra.mxu0 0.0
      %286 = vmatpush.xpose.msra.mxu0 0.0
      %287 = vmatpush.xpose.msra.mxu0 0.0
      %288 = vmatpush.xpose.msra.mxu0 0.0
      %289 = vmatpush.xpose.msra.mxu0 0.0
      %290 = vmatpush.xpose.msra.mxu0 0.0
      %291 = vmatpush.xpose.msra.mxu0 0.0
      %292 = vmatpush.xpose.msra.mxu0 0.0
      %293 = vmatpush.xpose.msra.mxu0 0.0
      %294 = vmatpush.xpose.msra.mxu0 0.0
      %295 = vmatpush.xpose.msra.mxu0 %v278
      %296 = vmatmul.f32.gmra.mxu0 %v275
      %v297 = vpop.f32.mrf.mxu0
      %v298 = vadd.f32 0.0, %v297
      %299 = vdwg.mxu0
      %v300 = vld [vmem:[#allocation2] sm:$0xff]
      %v301 = vsel %vm273, %v298, -inf
      %302 = vmax.xlane.f32.xlu0 %v301
      %v303 = vpop.xlane.xlu0 %302
      %v304 = vmax.f32 %v300, %v303
      %v305 = vsub.f32 %v300, %v304
      %v306 = vmul.f32 %v305, 1.442695
      %v307 = vpow.pop %v306
      %309 = vset.pattern.permute.xlu0 0
      %310 = vperm.xlu0 %309, %v304
      %v311 = vpop.permute.xlu0 %310
      %v313 = vsub.f32 %v298, %v311
      %v314 = vmul.f32 %v313, 1.442695
      %v315 = vpow.pop %v314
      %v316 = vld [vmem:[#allocation3] sm:$0xff]
      %v317 = vmul.f32 %v307, %v316
      %v318 = vsel %vm273, %v315, 0.0
      %319 = vadd.xlane.f32.xlu0 %v318
      %v320 = vpop.xlane.xlu0 %319
      %v321 = vadd.f32 %v317, %v320
      %vm322 = vcmask 7168
      %323 = vst.msk [vmem:[#allocation3] sm:$0xff] %vm322, %v321
      %v324 = vld [vmem:[#allocation4] sm:$0xff]
      %326 = vset.pattern.permute.xlu0 0
      %327 = vperm.xlu0 %326, %v307
      %v328 = vpop.permute.xlu0 %327
      %v330 = vmul.f32 %v328, %v324
      %v332 = vsel %vm273, %v315, 0
      %334 = vmatpush.msra.mxu0 0.0
      %335 = vmatpush.msra.mxu0 0.0
      %336 = vmatpush.msra.mxu0 0.0
      %337 = vmatpush.msra.mxu0 0.0
      %338 = vmatpush.msra.mxu0 0.0
      %339 = vmatpush.msra.mxu0 0.0
      %340 = vmatpush.msra.mxu0 0.0
      %341 = vmatpush.msra.mxu0 0.0
      %342 = vmatpush.msra.mxu0 0.0
      %343 = vmatpush.msra.mxu0 0.0
      %344 = vmatpush.msra.mxu0 0.0
      %345 = vmatpush.msra.mxu0 0.0
      %346 = vmatpush.msra.mxu0 0.0
      %347 = vmatpush.msra.mxu0 0.0
      %348 = vmatpush.msra.mxu0 0.0
      %349 = vmatpush.msra.mxu0 %v272
      %350 = vmatmul.f32.gmra.mxu0 %v332
      %v351 = vpop.f32.mrf.mxu0
      %v352 = vadd.f32 0.0, %v351
      %353 = vdwg.mxu0
      %v354 = vadd.f32 %v330, %v352
      %355 = vst.msk [vmem:[#allocation4] sm:$0xff] %vm273, %v354
      %356 = vst.msk [vmem:[#allocation2] sm:$0xff] %vm322, %v304
      // Predicated region
      $region37: #{eva_block_forward.6} parent=31 // pred_check
        %p357 = pneg %p260
      $region38: #{eva_block_forward.6} parent=31 // pred_check_branch
        %359 = sbr.rel (%p357) target = $region40
      $region39: #{eva_block_forward.6} parent=31 // pred_region
        %v360 = vld [vmem:[#allocation3] sm:$0xff]
        %v361 = vrcp.pop %v360
        %v362 = vld [vmem:[#allocation4] sm:$0xff]
        %364 = vset.pattern.permute.xlu0 0
        %365 = vperm.xlu0 %364, %v361
        %v366 = vpop.permute.xlu0 %365
        %v368 = vmul.f32 %v362, %v366
        %369 = vst.msk [vmem:[%s259] sm:$0xff] %vm273, %v368
      $region40: #{eva_block_forward.6} parent=31 // pred_fallthru
        _
      %p370 = scmp.lt.s32.totalorder %s19, 7
      %s371 = scalar_select %p370, %s19, 7
      %p372 = scmp.lt.s32.totalorder %s20, 0
      %s373 = scalar_select %p372, %s20, 0
      %s374 = sadd.s32 %s373, %s371
      %s375 = smul.addr %s374, 8
      %s376 = scalar_lea.vmem %s3, %s375
      // Predicated region
      $region41: #{eva_block_forward.6} parent=31 // pred_check
        %p377 = pneg %p137
      $region42: #{eva_block_forward.6} parent=31 // pred_check_branch
        %379 = sbr.rel (%p377) target = $region44
      $region43: #{eva_block_forward.6} parent=31 // pred_region
        _
      $region44: #{eva_block_forward.6} parent=31 // pred_fallthru
        _
    $region32: #{eva_block_forward.6} parent=5 // pred_fallthru
      _
    %p380 = scmp.le.s32.totalorder 2, %s9
    // Predicated region
    $region45: #{eva_block_forward.6} parent=5 // pred_check
      %p381 = pneg %p380
    $region46: #{eva_block_forward.6} parent=5 // pred_check_branch
      %383 = sbr.rel (%p381) target = $region48
    $region47: #{eva_block_forward.6} parent=5 // pred_region
      %s384 = ssub.s32 %s9, 2
      // Predicated region
      $region49: #{eva_block_forward.6} parent=47 // pred_check
        %p385 = pneg %p143
      $region50: #{eva_block_forward.6} parent=47 // pred_check_branch
        %387 = sbr.rel (%p385) target = $region52
      $region51: #{eva_block_forward.6} parent=47 // pred_region
        %p388 = scmp.lt.s32.totalorder %s22, 7
        %s389 = scalar_select %p388, %s22, 7
        %p390 = scmp.lt.s32.totalorder %s23, 0
        %s391 = scalar_select %p390, %s23, 0
        %s392 = sadd.s32 %s391, %s389
        %s393 = smul.addr %s392, 8
        %s394 = scalar_lea.vmem %s3, %s393
      $region52: #{eva_block_forward.6} parent=47 // pred_fallthru
        _
    $region48: #{eva_block_forward.6} parent=5 // pred_fallthru
      _
  $region6: #{eva_block_forward.6} parent=0 // loop_footer
    %s13 = sadd.s32 1, %s9
  $region7: #{eva_block_forward.6} parent=0 // loop_footer_branch
    %8 = sbr.rel target = $region3
  $region8: #{eva_block_forward.6} parent=0 // loop_exit
    _

// kernel: eva_block_forward.5
$region0: #{eva_block_forward.5}
  #allocation0 [shape = 'u32[]', space=smem, size = 0x4, offset = 0x4, fixed_abs, tag = 'smem constant byte address 0x4 - core index']
  #allocation1 [shape = 'u32[72,128]{1,0:T(1,128)}', space=vmem, size = 0x9000, scoped, tag = 'internal scratch']
  %s0 = inlined_call_operand.hbm [shape: f32[16,32], index: 0, kind: input, shape index: {}]
  %s1 = inlined_call_operand.hbm [shape: f32[32,96], index: 1, kind: input, shape index: {}]
  %s2 = inlined_call_operand.vmem [shape: f32[1,96], index: 2, kind: input, shape index: {}]
  %s3 = inlined_call_operand.vmem [shape: f32[1,32], index: 3, kind: input, shape index: {}]
  %s4 = inlined_call_operand.vmem [shape: f32[1,32], index: 4, kind: input, shape index: {}]
  %s5 = inlined_call_operand.vmem [shape: f32[16,96], index: 5, kind: output, shape index: {}]
  %s6 = sld [smem:[#allocation0]]
  $region38: #{eva_block_forward.5} parent=0
    _
  %s8 = ssub.s32 1, %s6
  %s9 = scalar_select 0, %s8, %s6
  $region1: #{eva_block_forward.5} parent=0
    #allocation2 [shape = 'u8[8192]{0}', space=vmem, size = 0x2000, scoped, tag = 'input window, operand 0, single buffered']
    #allocation3 [shape = 's32[1]{0}', space=sflag, size = 0x4, scoped, tag = 'scoped memory for eva_block_forward.5']
    #allocation4 [shape = 'u8[16384]{0}', space=vmem, size = 0x4000, scoped, tag = 'input window, operand 1, single buffered']
    #allocation5 [shape = 's32[1]{0}', space=sflag, size = 0x4, scoped, tag = 'scoped memory for eva_block_forward.5']
    %10 = vsyncpa [#allocation3], 0
    %11 = vsyncpa [#allocation5], 0
    // Predicated region
    $region2: #{eva_block_forward.5} parent=1 // pred_check
      _
    $region3: #{eva_block_forward.5} parent=1 // pred_check_branch
      %13 = sbr.rel (0) target = $region5
    $region4: #{eva_block_forward.5} parent=1 // pred_region
      %15 = vsyncadd [#allocation3], 0
      %s16 = sshll.u32 %s0, 4
      %s17 = int_to_ptr.hbm [resolvable:$true] %s16
      %s18 = sshll.u32 [#allocation2], 4
      %s19 = int_to_ptr.vmem [resolvable:$true] %s18
      %24 = dma.hbm_to_vmem [thread:$0]  %s17, 256, %s19, [#allocation3], 128, 128, 8
    $region5: #{eva_block_forward.5} parent=1 // pred_fallthru
      _
    // Predicated region
    $region6: #{eva_block_forward.5} parent=1 // pred_check
      _
    $region7: #{eva_block_forward.5} parent=1 // pred_check_branch
      %26 = sbr.rel (0) target = $region9
    $region8: #{eva_block_forward.5} parent=1 // pred_region
      %28 = vsyncadd [#allocation5], 0
      %s29 = sshll.u32 %s1, 4
      %s30 = int_to_ptr.hbm [resolvable:$true] %s29
      %s31 = sshll.u32 [#allocation4], 4
      %s32 = int_to_ptr.vmem [resolvable:$true] %s31
      %37 = dma.hbm_to_vmem [thread:$0]  %s30, 512, %s32, [#allocation5], 128, 128, 8
    $region9: #{eva_block_forward.5} parent=1 // pred_fallthru
      _
    // Predicated region
    $region10: #{eva_block_forward.5} parent=1 // pred_check
      _
    $region11: #{eva_block_forward.5} parent=1 // pred_check_branch
      %39 = sbr.rel (0) target = $region13
    $region12: #{eva_block_forward.5} parent=1 // pred_region
      _
    $region13: #{eva_block_forward.5} parent=1 // pred_fallthru
      _
    // Predicated region
    $region14: #{eva_block_forward.5} parent=1 // pred_check
      _
    $region15: #{eva_block_forward.5} parent=1 // pred_check_branch
      %41 = sbr.rel (0) target = $region17
    $region16: #{eva_block_forward.5} parent=1 // pred_region
      _
    $region17: #{eva_block_forward.5} parent=1 // pred_fallthru
      _
    // Predicated region
    $region18: #{eva_block_forward.5} parent=1 // pred_check
      _
    $region19: #{eva_block_forward.5} parent=1 // pred_check_branch
      %43 = sbr.rel (0) target = $region21
    $region20: #{eva_block_forward.5} parent=1 // pred_region
      _
    $region21: #{eva_block_forward.5} parent=1 // pred_fallthru
      _
    // Predicated region
    $region22: #{eva_block_forward.5} parent=1 // pred_check
      _
    $region23: #{eva_block_forward.5} parent=1 // pred_check_branch
      %45 = sbr.rel (0) target = $region25
    $region24: #{eva_block_forward.5} parent=1 // pred_region
      %47 = dma.done [#allocation3], 256
    $region25: #{eva_block_forward.5} parent=1 // pred_fallthru
      _
    // Predicated region
    $region26: #{eva_block_forward.5} parent=1 // pred_check
      _
    $region27: #{eva_block_forward.5} parent=1 // pred_check_branch
      %49 = sbr.rel (0) target = $region29
    $region28: #{eva_block_forward.5} parent=1 // pred_region
      %51 = dma.done [#allocation5], 512
    $region29: #{eva_block_forward.5} parent=1 // pred_fallthru
      _
    %v52 = vld [vmem:[#allocation2] sm:$0xff]
    %v53 = vld [vmem:[#allocation2 + $0x8] sm:$0xff]
    %v54 = vld [vmem:[%s3] sm:$0x1]
    %v55 = vld [vmem:[%s4] sm:$0x1]
    %vm56 = vcmask 261120
    %v57 = vsel %vm56, %v52, 0.0
    %58 = vadd.xlane.f32.xlu0 %v57
    %v59 = vpop.xlane.xlu0 %58
    %v60 = vsel %vm56, %v53, 0.0
    %61 = vadd.xlane.f32.xlu0 %v60
    %v62 = vpop.xlane.xlu0 %61
    %v63 = vrcp.pop 32.0
    %v64 = vmul.f32 32.0, %v63
    %v65 = vsub.f32 1.0, %v64
    %v66 = vmul.f32 %v63, %v65
    %v67 = vadd.f32 %v63, %v66
    %vm68 = vweird.f32 %v63
    %v69 = vsel %vm68, %v63, %v67
    %v70 = vmul.f32 %v59, %v69
    %v71 = vmul.f32 %v62, %v69
    %v72 = vsub.f32 %v52, %v70
    %v73 = vsub.f32 %v53, %v71
    %v74 = vmul.f32 %v72, %v72
    %v75 = vmul.f32 %v73, %v73
    %v76 = vsel %vm56, %v74, 0.0
    %77 = vadd.xlane.f32.xlu0 %v76
    %v78 = vpop.xlane.xlu0 %77
    %v79 = vsel %vm56, %v75, 0.0
    %80 = vadd.xlane.f32.xlu0 %v79
    %v81 = vpop.xlane.xlu0 %80
    %v82 = vmul.f32 %v78, %v69
    %v83 = vmul.f32 %v81, %v69
    %v84 = vadd.f32 %v82, 1e-06
    %v85 = vadd.f32 %v83, 1e-06
    %v86 = vrsqrt.pop %v84
    %v87 = vmul.f32 %v86, %v84
    %v88 = vmul.f32 %v87, %v86
    %v89 = vmul.f32 0.5, %v88
    %v90 = vsub.f32 1.5, %v89
    %v91 = vmul.f32 %v86, %v90
    %vm92 = vweird.f32 %v84
    %vm93 = vweird.f32 %v86
    %vm94 = vmor %vm92, %vm93
    %v95 = vsel %vm94, %v86, %v91
    %v96 = vrsqrt.pop %v85
    %v97 = vmul.f32 %v96, %v85
    %v98 = vmul.f32 %v97, %v96
    %v99 = vmul.f32 0.5, %v98
    %v100 = vsub.f32 1.5, %v99
    %v101 = vmul.f32 %v96, %v100
    %vm102 = vweird.f32 %v85
    %vm103 = vweird.f32 %v96
    %vm104 = vmor %vm102, %vm103
    %v105 = vsel %vm104, %v96, %v101
    %v106 = vmul.f32 %v72, %v95
    %v107 = vmul.f32 %v73, %v105
    %v109 = vperm.slane %v54, 0
    %v111 = vmul.f32 %v106, %v109
    %v112 = vmul.f32 %v107, %v109
    %v114 = vperm.slane %v55, 0
    %v116 = vadd.f32 %v111, %v114
    %v117 = vadd.f32 %v112, %v114
    %v118 = vld [vmem:[#allocation4] sm:$0xff]
    %v119 = vld [vmem:[#allocation4 + $0x8] sm:$0xff]
    %v120 = vld [vmem:[#allocation4 + $0x10] sm:$0xff]
    %v121 = vld [vmem:[#allocation4 + $0x18] sm:$0xff]
    %v122 = vld [vmem:[%s2] sm:$0x1]
    %v124 = vperm.slane %v122, 0
    %v127 = vsel %vm56, %v116, 0
    %v130 = vsel %vm56, %v117, 0
    %132 = vmatpush.msra.mxu0 0.0
    %133 = vmatpush.msra.mxu0 0.0
    %134 = vmatpush.msra.mxu0 0.0
    %135 = vmatpush.msra.mxu0 0.0
    %136 = vmatpush.msra.mxu0 0.0
    %137 = vmatpush.msra.mxu0 0.0
    %138 = vmatpush.msra.mxu0 0.0
    %139 = vmatpush.msra.mxu0 0.0
    %140 = vmatpush.msra.mxu0 0.0
    %141 = vmatpush.msra.mxu0 0.0
    %142 = vmatpush.msra.mxu0 0.0
    %143 = vmatpush.msra.mxu0 0.0
    %144 = vmatpush.msra.mxu0 %v121
    %145 = vmatpush.msra.mxu0 %v120
    %146 = vmatpush.msra.mxu0 %v119
    %147 = vmatpush.msra.mxu0 %v118
    %148 = vmatmul.f32.gmra.mxu0 %v127
    %v149 = vpop.f32.mrf.mxu0
    %v150 = vadd.f32 %v124, %v149
    %151 = vmatmul.f32.gmra.mxu0 %v130
    %v152 = vpop.f32.mrf.mxu0
    %v153 = vadd.f32 %v124, %v152
    %154 = vdwg.mxu0
    %vm155 = vcmask 785408
    %156 = vst.msk [vmem:[%s5] sm:$0xff] %vm155, %v150
    %157 = vst.msk [vmem:[%s5 + $0x8] sm:$0xff] %vm155, %v153
    // Predicated region
    $region30: #{eva_block_forward.5} parent=1 // pred_check
      _
    $region31: #{eva_block_forward.5} parent=1 // pred_check_branch
      %159 = sbr.rel (0) target = $region33
    $region32: #{eva_block_forward.5} parent=1 // pred_region
      _
    $region33: #{eva_block_forward.5} parent=1 // pred_fallthru
      _
    // Predicated region
    $region34: #{eva_block_forward.5} parent=1 // pred_check
      _
    $region35: #{eva_block_forward.5} parent=1 // pred_check_branch
      %161 = sbr.rel (0) target = $region37
    $region36: #{eva_block_forward.5} parent=1 // pred_region
      _
    $region37: #{eva_block_forward.5} parent=1 // pred_fallthru
      _
    %162 = vsyncpa [#allocation3], 1
    %163 = vsyncpa [#allocation5], 1

// kernel: eva_block_forward.8
$region0: #{eva_block_forward.8}
  #allocation0 [shape = 'u32[]', space=smem, size = 0x4, offset = 0x4, fixed_abs, tag = 'smem constant byte address 0x4 - core index']
  #allocation1 [shape = 'u32[72,128]{1,0:T(1,128)}', space=vmem, size = 0x9000, scoped, tag = 'internal scratch']
  %s0 = inlined_call_operand.vmem [shape: f32[16,32], index: 0, kind: input, shape index: {}]
  %s1 = inlined_call_operand.vmem [shape: f32[32,128], index: 1, kind: input, shape index: {}]
  %s2 = inlined_call_operand.vmem [shape: f32[1,128], index: 2, kind: input, shape index: {}]
  %s3 = inlined_call_operand.vmem [shape: f32[1,32], index: 3, kind: input, shape index: {}]
  %s4 = inlined_call_operand.vmem [shape: f32[1,32], index: 4, kind: input, shape index: {}]
  %s5 = inlined_call_operand.vmem [shape: f32[16,128], index: 5, kind: output, shape index: {}]
  %s6 = sld [smem:[#allocation0]]
  $region30: #{eva_block_forward.8} parent=0
    _
  %s8 = ssub.s32 1, %s6
  %s9 = scalar_select 0, %s8, %s6
  // Predicated region
  $region2: #{eva_block_forward.8} parent=0 // pred_check
    _
  $region3: #{eva_block_forward.8} parent=0 // pred_check_branch
    %11 = sbr.rel (0) target = $region5
  $region4: #{eva_block_forward.8} parent=0 // pred_region
    _
  $region5: #{eva_block_forward.8} parent=0 // pred_fallthru
    _
  // Predicated region
  $region6: #{eva_block_forward.8} parent=0 // pred_check
    _
  $region7: #{eva_block_forward.8} parent=0 // pred_check_branch
    %13 = sbr.rel (0) target = $region9
  $region8: #{eva_block_forward.8} parent=0 // pred_region
    _
  $region9: #{eva_block_forward.8} parent=0 // pred_fallthru
    _
  // Predicated region
  $region10: #{eva_block_forward.8} parent=0 // pred_check
    _
  $region11: #{eva_block_forward.8} parent=0 // pred_check_branch
    %15 = sbr.rel (0) target = $region13
  $region12: #{eva_block_forward.8} parent=0 // pred_region
    _
  $region13: #{eva_block_forward.8} parent=0 // pred_fallthru
    _
  // Predicated region
  $region14: #{eva_block_forward.8} parent=0 // pred_check
    _
  $region15: #{eva_block_forward.8} parent=0 // pred_check_branch
    %17 = sbr.rel (0) target = $region17
  $region16: #{eva_block_forward.8} parent=0 // pred_region
    _
  $region17: #{eva_block_forward.8} parent=0 // pred_fallthru
    _
  // Predicated region
  $region18: #{eva_block_forward.8} parent=0 // pred_check
    _
  $region19: #{eva_block_forward.8} parent=0 // pred_check_branch
    %19 = sbr.rel (0) target = $region21
  $region20: #{eva_block_forward.8} parent=0 // pred_region
    _
  $region21: #{eva_block_forward.8} parent=0 // pred_fallthru
    _
  %v20 = vld [vmem:[%s0] sm:$0xff]
  %v21 = vld [vmem:[%s0 + $0x8] sm:$0xff]
  %v22 = vld [vmem:[%s3] sm:$0x1]
  %v23 = vld [vmem:[%s4] sm:$0x1]
  %vm24 = vcmask 261120
  %v25 = vsel %vm24, %v20, 0.0
  %26 = vadd.xlane.f32.xlu0 %v25
  %v27 = vpop.xlane.xlu0 %26
  %v28 = vsel %vm24, %v21, 0.0
  %29 = vadd.xlane.f32.xlu0 %v28
  %v30 = vpop.xlane.xlu0 %29
  %v31 = vrcp.pop 32.0
  %v32 = vmul.f32 32.0, %v31
  %v33 = vsub.f32 1.0, %v32
  %v34 = vmul.f32 %v31, %v33
  %v35 = vadd.f32 %v31, %v34
  %vm36 = vweird.f32 %v31
  %v37 = vsel %vm36, %v31, %v35
  %v38 = vmul.f32 %v27, %v37
  %v39 = vmul.f32 %v30, %v37
  %v40 = vsub.f32 %v20, %v38
  %v41 = vsub.f32 %v21, %v39
  %v42 = vmul.f32 %v40, %v40
  %v43 = vmul.f32 %v41, %v41
  %v44 = vsel %vm24, %v42, 0.0
  %45 = vadd.xlane.f32.xlu0 %v44
  %v46 = vpop.xlane.xlu0 %45
  %v47 = vsel %vm24, %v43, 0.0
  %48 = vadd.xlane.f32.xlu0 %v47
  %v49 = vpop.xlane.xlu0 %48
  %v50 = vmul.f32 %v46, %v37
  %v51 = vmul.f32 %v49, %v37
  %v52 = vadd.f32 %v50, 1e-06
  %v53 = vadd.f32 %v51, 1e-06
  %v54 = vrsqrt.pop %v52
  %v55 = vmul.f32 %v54, %v52
  %v56 = vmul.f32 %v55, %v54
  %v57 = vmul.f32 0.5, %v56
  %v58 = vsub.f32 1.5, %v57
  %v59 = vmul.f32 %v54, %v58
  %vm60 = vweird.f32 %v52
  %vm61 = vweird.f32 %v54
  %vm62 = vmor %vm60, %vm61
  %v63 = vsel %vm62, %v54, %v59
  %v64 = vrsqrt.pop %v53
  %v65 = vmul.f32 %v64, %v53
  %v66 = vmul.f32 %v65, %v64
  %v67 = vmul.f32 0.5, %v66
  %v68 = vsub.f32 1.5, %v67
  %v69 = vmul.f32 %v64, %v68
  %vm70 = vweird.f32 %v53
  %vm71 = vweird.f32 %v64
  %vm72 = vmor %vm70, %vm71
  %v73 = vsel %vm72, %v64, %v69
  %v74 = vmul.f32 %v40, %v63
  %v75 = vmul.f32 %v41, %v73
  %v77 = vperm.slane %v22, 0
  %v79 = vmul.f32 %v74, %v77
  %v80 = vmul.f32 %v75, %v77
  %v82 = vperm.slane %v23, 0
  %v84 = vadd.f32 %v79, %v82
  %v85 = vadd.f32 %v80, %v82
  %v86 = vld [vmem:[%s1] sm:$0xff]
  %v87 = vld [vmem:[%s1 + $0x8] sm:$0xff]
  %v88 = vld [vmem:[%s1 + $0x10] sm:$0xff]
  %v89 = vld [vmem:[%s1 + $0x18] sm:$0xff]
  %v90 = vld [vmem:[%s2] sm:$0x1]
  %v92 = vperm.slane %v90, 0
  %v95 = vsel %vm24, %v84, 0
  %v98 = vsel %vm24, %v85, 0
  %100 = vmatpush.msra.mxu0 0.0
  %101 = vmatpush.msra.mxu0 0.0
  %102 = vmatpush.msra.mxu0 0.0
  %103 = vmatpush.msra.mxu0 0.0
  %104 = vmatpush.msra.mxu0 0.0
  %105 = vmatpush.msra.mxu0 0.0
  %106 = vmatpush.msra.mxu0 0.0
  %107 = vmatpush.msra.mxu0 0.0
  %108 = vmatpush.msra.mxu0 0.0
  %109 = vmatpush.msra.mxu0 0.0
  %110 = vmatpush.msra.mxu0 0.0
  %111 = vmatpush.msra.mxu0 0.0
  %112 = vmatpush.msra.mxu0 %v89
  %113 = vmatpush.msra.mxu0 %v88
  %114 = vmatpush.msra.mxu0 %v87
  %115 = vmatpush.msra.mxu0 %v86
  %116 = vmatmul.f32.gmra.mxu0 %v95
  %v117 = vpop.f32.mrf.mxu0
  %v118 = vadd.f32 %v92, %v117
  %119 = vmatmul.f32.gmra.mxu0 %v98
  %v120 = vpop.f32.mrf.mxu0
  %v121 = vadd.f32 %v92, %v120
  %122 = vdwg.mxu0
  %v123 = vmul.f32 %v118, 0.5
  %v124 = vmul.f32 %v121, 0.5
  %v125 = vmul.f32 %v118, 0.70710677
  %v126 = vmul.f32 %v121, 0.70710677
  %vm127 = vcmp.ge.f32.partialorder %v125, 0.0
  %vm128 = vcmp.ge.f32.partialorder %v126, 0.0
  %v129 = vsel %vm127, 1.0, -1.0
  %v130 = vsel %vm128, 1.0, -1.0
  %v131 = vand.u32 2147483647, %v125
  %v132 = vand.u32 2147483647, %v126
  %v133 = vmul.f32 %v131, 0.3275911
  %v134 = vmul.f32 %v132, 0.3275911
  %v135 = vadd.f32 %v133, 1.0
  %v136 = vadd.f32 %v134, 1.0
  %v137 = vrcp.pop %v135
  %v138 = vmul.f32 %v135, %v137
  %v139 = vsub.f32 1.0, %v138
  %v140 = vmul.f32 %v137, %v139
  %v141 = vadd.f32 %v137, %v140
  %vm142 = vweird.f32 %v135
  %vm143 = vweird.f32 %v137
  %vm144 = vmor %vm142, %vm143
  %v145 = vsel %vm144, %v137, %v141
  %v146 = vand.u32 2147483647, %v135
  %vm147 = vcmp.eq.f32.partialorder %v146, 8.507059e+37
  %v148 = vand.u32 %v135, 2147483648
  %v149 = vor.u32 1.1754944e-38, %v148
  %v150 = vsel %vm147, %v149, %v145
  %v151 = vmul.f32 1.0, %v150
  %v152 = vrcp.pop %v136
  %v153 = vmul.f32 %v136, %v152
  %v154 = vsub.f32 1.0, %v153
  %v155 = vmul.f32 %v152, %v154
  %v156 = vadd.f32 %v152, %v155
  %vm157 = vweird.f32 %v136
  %vm158 = vweird.f32 %v152
  %vm159 = vmor %vm157, %vm158
  %v160 = vsel %vm159, %v152, %v156
  %v161 = vand.u32 2147483647, %v136
  %vm162 = vcmp.eq.f32.partialorder %v161, 8.507059e+37
  %v163 = vand.u32 %v136, 2147483648
  %v164 = vor.u32 1.1754944e-38, %v163
  %v165 = vsel %vm162, %v164, %v160
  %v166 = vmul.f32 1.0, %v165
  %v167 = vmul.f32 %v151, 1.0614054
  %v168 = vmul.f32 %v166, 1.0614054
  %v169 = vadd.f32 %v167, -1.4531521
  %v170 = vadd.f32 %v168, -1.4531521
  %v171 = vmul.f32 %v169, %v151
  %v172 = vmul.f32 %v170, %v166
  %v173 = vadd.f32 %v171, 1.4214138
  %v174 = vadd.f32 %v172, 1.4214138
  %v175 = vmul.f32 %v173, %v151
  %v176 = vmul.f32 %v174, %v166
  %v177 = vadd.f32 %v175, -0.28449672
  %v178 = vadd.f32 %v176, -0.28449672
  %v179 = vmul.f32 %v177, %v151
  %v180 = vmul.f32 %v178, %v166
  %v181 = vadd.f32 %v179, 0.2548296
  %v182 = vadd.f32 %v180, 0.2548296
  %v183 = vmul.f32 %v181, %v151
  %v184 = vmul.f32 %v182, %v166
  %v185 = vsub.f32 0.0, %v131
  %v186 = vsub.f32 0.0, %v132
  %v187 = vmul.f32 %v185, %v131
  %v188 = vmul.f32 %v186, %v132
  %v189 = vmul.f32 %v187, 1.442695
  %v190 = vpow.pop %v189
  %v191 = vmul.f32 %v188, 1.442695
  %v192 = vpow.pop %v191
  %v193 = vmul.f32 %v183, %v190
  %v194 = vmul.f32 %v184, %v192
  %v195 = vsub.f32 1.0, %v193
  %v196 = vsub.f32 1.0, %v194
  %v197 = vmul.f32 %v129, %v195
  %v198 = vmul.f32 %v130, %v196
  %v199 = vadd.f32 %v197, 1.0
  %v200 = vadd.f32 %v198, 1.0
  %v201 = vmul.f32 %v123, %v199
  %v202 = vmul.f32 %v124, %v200
  %203 = vst [vmem:[%s5] sm:$0xff] %v201
  %204 = vst [vmem:[%s5 + $0x8] sm:$0xff] %v202
  // Predicated region
  $region22: #{eva_block_forward.8} parent=0 // pred_check
    _
  $region23: #{eva_block_forward.8} parent=0 // pred_check_branch
    %206 = sbr.rel (0) target = $region25
  $region24: #{eva_block_forward.8} parent=0 // pred_region
    _
  $region25: #{eva_block_forward.8} parent=0 // pred_fallthru
    _
  // Predicated region
  $region26: #{eva_block_forward.8} parent=0 // pred_check
    _
  $region27: #{eva_block_forward.8} parent=0 // pred_check_branch
    %208 = sbr.rel (0) target = $region29
  $region28: #{eva_block_forward.8} parent=0 // pred_region
    _
  $region29: #{eva_block_forward.8} parent=0 // pred_fallthru
    _

// kernel: eva_block_forward.9
$region0: #{eva_block_forward.9}
  #allocation0 [shape = 'u32[]', space=smem, size = 0x4, offset = 0x4, fixed_abs, tag = 'smem constant byte address 0x4 - core index']
  #allocation1 [shape = 'u32[72,128]{1,0:T(1,128)}', space=vmem, size = 0x9000, scoped, tag = 'internal scratch']
  %s0 = inlined_call_operand.vmem [shape: f32[16,128], index: 0, kind: input, shape index: {}]
  %s1 = inlined_call_operand.vmem [shape: f32[128,32], index: 1, kind: input, shape index: {}]
  %s2 = inlined_call_operand.vmem [shape: f32[1,32], index: 2, kind: input, shape index: {}]
  %s3 = inlined_call_operand.vmem [shape: f32[16,32], index: 3, kind: input, shape index: {}]
  %s4 = inlined_call_operand.hbm [shape: f32[16,32], index: 4, kind: output, shape index: {}]
  %s5 = sld [smem:[#allocation0]]
  $region26: #{eva_block_forward.9} parent=0
    _
  %s7 = ssub.s32 1, %s5
  %s8 = scalar_select 0, %s7, %s5
  $region1: #{eva_block_forward.9} parent=0
    #allocation2 [shape = 'u8[8192]{0}', space=vmem, size = 0x2000, scoped, tag = 'output window, operand 0, single buffered']
    #allocation3 [shape = 's32[1]{0}', space=sflag, size = 0x4, scoped, tag = 'scoped memory for eva_block_forward.9']
    %9 = vsyncpa [#allocation3], 0
    // Predicated region
    $region2: #{eva_block_forward.9} parent=1 // pred_check
      _
    $region3: #{eva_block_forward.9} parent=1 // pred_check_branch
      %11 = sbr.rel (0) target = $region5
    $region4: #{eva_block_forward.9} parent=1 // pred_region
      _
    $region5: #{eva_block_forward.9} parent=1 // pred_fallthru
      _
    // Predicated region
    $region6: #{eva_block_forward.9} parent=1 // pred_check
      _
    $region7: #{eva_block_forward.9} parent=1 // pred_check_branch
      %13 = sbr.rel (0) target = $region9
    $region8: #{eva_block_forward.9} parent=1 // pred_region
      _
    $region9: #{eva_block_forward.9} parent=1 // pred_fallthru
      _
    // Predicated region
    $region10: #{eva_block_forward.9} parent=1 // pred_check
      _
    $region11: #{eva_block_forward.9} parent=1 // pred_check_branch
      %15 = sbr.rel (0) target = $region13
    $region12: #{eva_block_forward.9} parent=1 // pred_region
      _
    $region13: #{eva_block_forward.9} parent=1 // pred_fallthru
      _
    // Predicated region
    $region14: #{eva_block_forward.9} parent=1 // pred_check
      _
    $region15: #{eva_block_forward.9} parent=1 // pred_check_branch
      %17 = sbr.rel (0) target = $region17
    $region16: #{eva_block_forward.9} parent=1 // pred_region
      _
    $region17: #{eva_block_forward.9} parent=1 // pred_fallthru
      _
    %v18 = vld [vmem:[%s0] sm:$0xff]
    %v19 = vld [vmem:[%s0 + $0x8] sm:$0xff]
    %v20 = vld [vmem:[%s1] sm:$0xff]
    %v21 = vld [vmem:[%s1 + $0x8] sm:$0xff]
    %v22 = vld [vmem:[%s1 + $0x10] sm:$0xff]
    %v23 = vld [vmem:[%s1 + $0x18] sm:$0xff]
    %v24 = vld [vmem:[%s1 + $0x20] sm:$0xff]
    %v25 = vld [vmem:[%s1 + $0x28] sm:$0xff]
    %v26 = vld [vmem:[%s1 + $0x30] sm:$0xff]
    %v27 = vld [vmem:[%s1 + $0x38] sm:$0xff]
    %v28 = vld [vmem:[%s1 + $0x40] sm:$0xff]
    %v29 = vld [vmem:[%s1 + $0x48] sm:$0xff]
    %v30 = vld [vmem:[%s1 + $0x50] sm:$0xff]
    %v31 = vld [vmem:[%s1 + $0x58] sm:$0xff]
    %v32 = vld [vmem:[%s1 + $0x60] sm:$0xff]
    %v33 = vld [vmem:[%s1 + $0x68] sm:$0xff]
    %v34 = vld [vmem:[%s1 + $0x70] sm:$0xff]
    %v35 = vld [vmem:[%s1 + $0x78] sm:$0xff]
    %v36 = vld [vmem:[%s2] sm:$0x1]
    %v38 = vperm.slane %v36, 0
    %40 = vmatpush.msra.mxu0 %v35
    %41 = vmatpush.msra.mxu0 %v34
    %42 = vmatpush.msra.mxu0 %v33
    %43 = vmatpush.msra.mxu0 %v32
    %44 = vmatpush.msra.mxu0 %v31
    %45 = vmatpush.msra.mxu0 %v30
    %46 = vmatpush.msra.mxu0 %v29
    %47 = vmatpush.msra.mxu0 %v28
    %48 = vmatpush.msra.mxu0 %v27
    %49 = vmatpush.msra.mxu0 %v26
    %50 = vmatpush.msra.mxu0 %v25
    %51 = vmatpush.msra.mxu0 %v24
    %52 = vmatpush.msra.mxu0 %v23
    %53 = vmatpush.msra.mxu0 %v22
    %54 = vmatpush.msra.mxu0 %v21
    %55 = vmatpush.msra.mxu0 %v20
    %56 = vmatmul.f32.gmra.mxu0 %v18
    %v57 = vpop.f32.mrf.mxu0
    %v58 = vadd.f32 %v38, %v57
    %59 = vmatmul.f32.gmra.mxu0 %v19
    %v60 = vpop.f32.mrf.mxu0
    %v61 = vadd.f32 %v38, %v60
    %62 = vdwg.mxu0
    %v63 = vld [vmem:[%s3] sm:$0xff]
    %v64 = vld [vmem:[%s3 + $0x8] sm:$0xff]
    %v65 = vadd.f32 %v58, %v63
    %v66 = vadd.f32 %v61, %v64
    %vm67 = vcmask 261120
    %68 = vst.msk [vmem:[#allocation2] sm:$0xff] %vm67, %v65
    %69 = vst.msk [vmem:[#allocation2 + $0x8] sm:$0xff] %vm67, %v66
    // Predicated region
    $region18: #{eva_block_forward.9} parent=1 // pred_check
      _
    $region19: #{eva_block_forward.9} parent=1 // pred_check_branch
      %71 = sbr.rel (0) target = $region21
    $region20: #{eva_block_forward.9} parent=1 // pred_region
      %73 = vsyncadd [#allocation3], 0
      %s74 = sshll.u32 [#allocation2], 4
      %s75 = int_to_ptr.vmem [resolvable:$true] %s74
      %s76 = sshll.u32 %s4, 4
      %s77 = int_to_ptr.hbm [resolvable:$true] %s76
      %82 = dma.vmem_to_hbm [thread:$0]  %s75, 256, %s77, [#allocation3], 128, 128, 8
    $region21: #{eva_block_forward.9} parent=1 // pred_fallthru
      _
    // Predicated region
    $region22: #{eva_block_forward.9} parent=1 // pred_check
      _
    $region23: #{eva_block_forward.9} parent=1 // pred_check_branch
      %84 = sbr.rel (0) target = $region25
    $region24: #{eva_block_forward.9} parent=1 // pred_region
      %86 = dma.done [#allocation3], 256
    $region25: #{eva_block_forward.9} parent=1 // pred_fallthru
      _
    %87 = vsyncpa [#allocation3], 1

</llo_original>
